<compile_context>
chip_gen: v6e
topology: v6e:2x2x1
jax: 0.10.0
libtpu: 0.0.40
codegen_flags: <defaults>
</compile_context>

<pallas_src>
import jax
import jax.numpy as jnp
import numpy as np
from jax import lax
from jax.experimental import pallas as pl
from jax.experimental.pallas import tpu as pltpu

PAD_IDX, UNK_IDX, SOS_IDX, EOS_IDX = 0, 1, 2, 3


def _gru_chunk_kernel(emb_ref, mask_ref, w_ih_ref, w_hh_ref, b_gi_ref, b_hn_ref,
                      out_ref, hid_ref, gi_ref, h_ref):
    """One grid step == one (direction, time-chunk) of the bi-GRU."""
    C, B, Hh = out_ref.shape          # chunk timesteps, padded batch, per-dir hidden
    d = pl.program_id(0)              # direction: 0 = forward, 1 = backward
    c = pl.program_id(1)              # chunk index (blocks already reversed for bwd)

    @pl.when(c == 0)
    def _():                          # zero initial hidden at the start of each direction
        h_ref[...] = jnp.zeros_like(h_ref)

    # (1) Chunk input projection hoisted out of the serial recurrence:
    #     three per-gate bf16 MXU matmuls (f32 accumulate) with b_ih and the
    #     r/z recurrent biases folded in, stored to a bf16 (gate, t, B, Hh)
    #     scratch so per-step gate reads index leading (non-lane) axes only.
    x = emb_ref[...]                                          # (C*B, H) bf16
    for g in range(3):                                        # static gate unroll
        gi = jnp.dot(x, w_ih_ref[g],
                     preferred_element_type=jnp.float32) + b_gi_ref[g]
        for t in range(C):                                    # static, B-aligned slices
            gi_ref[g, t] = gi[t * B:(t + 1) * B, :].astype(gi_ref.dtype)

    # Loop-invariant recurrent weight (bf16) and hoisted n-gate bias broadcast.
    w_hh = w_hh_ref[...]                                      # (Hh, 3*Hh) bf16
    b_hn = jnp.broadcast_to(b_hn_ref[...], (B, Hh))           # (B, Hh) f32

    def step(i, h):
        # forward walks local t = 0..C-1; backward walks C-1..0
        t = jnp.where(d == 0, i, C - 1 - i)
        gi_r = gi_ref[0, t].astype(jnp.float32)               # (B, Hh)
        gi_z = gi_ref[1, t].astype(jnp.float32)
        gi_n = gi_ref[2, t].astype(jnp.float32)
        m = mask_ref[t]                                       # (B, 1) valid-token mask
        # recurrent matmul in bf16 (f32 accumulation): 1 MXU pass per step
        gh = jnp.dot(h.astype(jnp.bfloat16), w_hh,
                     preferred_element_type=jnp.float32)      # (B, 3*Hh)
        # PyTorch GRU gate order (r, z, n); r/z biases already folded into gi
        r = jax.nn.sigmoid(gi_r + gh[:, 0:Hh])
        z = jax.nn.sigmoid(gi_z + gh[:, Hh:2 * Hh])
        n = jnp.tanh(gi_n + r * (gh[:, 2 * Hh:3 * Hh] + b_hn))
        h_new = (1.0 - z) * n + z * h
        # pack_padded_sequence: state advances only on valid timesteps;
        # pad_packed_sequence: padded positions produce zero output.
        h = m * h_new + (1.0 - m) * h
        out_ref[t] = (m * h).astype(out_ref.dtype)            # direct per-step store
        return h

    h_fin = lax.fori_loop(0, C, step, h_ref[...], unroll=min(4, C))
    h_ref[...] = h_fin                  # carry hidden state to the next chunk
    hid_ref[...] = h_fin                # resident output; written back after last chunk


def encoder_gru_forward(input_seqs, input_lengths, params, *, max_chunk_t=4):
    """input_seqs: (B, T) int32, input_lengths: (B,) int32 (sorted descending)."""
    emb_table = params["embedding"]                  # (V, H)
    B, T = input_seqs.shape
    H = emb_table.shape[1]
    Hh = H // 2

    # Pad batch to a sublane multiple so all in-kernel row slices are aligned.
    # Padded rows get length 0 -> fully masked, sliced off below.
    Bp = ((B + 7) // 8) * 8
    seqs_p = jnp.pad(input_seqs, ((0, Bp - B), (0, 0)), constant_values=PAD_IDX)
    lens_p = jnp.pad(input_lengths, (0, Bp - B))

    # Time-chunk size: largest divisor of T that is <= max_chunk_t.
    C = 1
    for cand in range(min(T, max_chunk_t), 0, -1):
        if T % cand == 0:
            C = cand
            break
    NC = T // C

    # Embedding gather directly in time-major order (no (B,T,H)->(T,B,H) relayout),
    # pre-split into chunks so each kernel emb block is a plain 2-D (C*Bp, H) tile.
    emb_tm = jnp.take(emb_table, seqs_p.T, axis=0)                         # (T, Bp, H)
    emb_chunks = emb_tm.reshape(NC, C * Bp, H).astype(jnp.bfloat16)        # (NC, C*Bp, H)
    mask_tm = (jnp.arange(T)[:, None] < lens_p[None, :]
               ).astype(jnp.float32)[:, :, None]                           # (T, Bp, 1)

    def per_gate(w):      # (3*Hh, H) -> (3, H, Hh), PyTorch gate order (r, z, n)
        return jnp.transpose(w.reshape(3, Hh, H), (0, 2, 1))

    w_ih_s = jnp.stack([per_gate(params["w_ih_f"]),
                        per_gate(params["w_ih_b"])]).astype(jnp.bfloat16)  # (2,3,H,Hh)
    w_hh_s = jnp.stack([params["w_hh_f"].T,
                        params["w_hh_b"].T]).astype(jnp.bfloat16)          # (2,Hh,3Hh)

    def gi_bias(b_ih, b_hh):   # fold b_ih + (r, z) parts of b_hh; n gate keeps only b_in
        keep = jnp.array([1.0, 1.0, 0.0], jnp.float32)[:, None, None]
        return b_ih.reshape(3, 1, Hh) + b_hh.reshape(3, 1, Hh) * keep

    b_gi_s = jnp.stack([gi_bias(params["b_ih_f"], params["b_hh_f"]),
                        gi_bias(params["b_ih_b"], params["b_hh_b"])]
                       ).astype(jnp.float32)                               # (2,3,1,Hh)
    b_hn_s = jnp.stack([params["b_hh_f"][2 * Hh:][None, :],
                        params["b_hh_b"][2 * Hh:][None, :]]
                       ).astype(jnp.float32)                               # (2,1,Hh)

    def t_blk(d, c):   # chunk c for forward (d=0), chunk NC-1-c for backward (d=1)
        return c + d * (NC - 1 - 2 * c)

    out_db, hid_db = pl.pallas_call(
        _gru_chunk_kernel,
        out_shape=(
            jax.ShapeDtypeStruct((2, T, Bp, Hh), jnp.bfloat16),  # bf16: halves HBM writeback
            jax.ShapeDtypeStruct((2, Bp, Hh), jnp.float32),      # final hidden per direction
        ),
        grid=(2, NC),
        in_specs=[
            pl.BlockSpec((None, C * Bp, H), lambda d, c: (t_blk(d, c), 0, 0)),   # emb chunk
            pl.BlockSpec((C, Bp, 1), lambda d, c: (t_blk(d, c), 0, 0)),          # mask chunk
            pl.BlockSpec((None, 3, H, Hh), lambda d, c: (d, 0, 0, 0)),           # w_ih (resident)
            pl.BlockSpec((None, Hh, 3 * Hh), lambda d, c: (d, 0, 0)),            # w_hh (resident)
            pl.BlockSpec((None, 3, 1, Hh), lambda d, c: (d, 0, 0, 0)),           # folded gi bias
            pl.BlockSpec((None, 1, Hh), lambda d, c: (d, 0, 0)),                 # n-gate b_hh
        ],
        out_specs=(
            pl.BlockSpec((None, C, Bp, Hh), lambda d, c: (d, t_blk(d, c), 0, 0)),
            pl.BlockSpec((None, Bp, Hh), lambda d, c: (d, 0, 0)),
        ),
        scratch_shapes=[
            pltpu.VMEM((3, C, Bp, Hh), jnp.bfloat16),   # per-gate input projections (one chunk)
            pltpu.VMEM((Bp, Hh), jnp.float32),          # hidden state carried across chunks
        ],
        compiler_params=pltpu.CompilerParams(
            dimension_semantics=("parallel", "arbitrary"),
            vmem_limit_bytes=48 * 1024 * 1024,
        ),
    )(emb_chunks, mask_tm, w_ih_s, w_hh_s, b_gi_s, b_hn_s)

    # fwd/bwd concat (== EncoderRNN.transform for a 1-layer bi-GRU) in XLA; cast
    # back to f32 to match the PyTorch module's dtype; drop the batch padding.
    outputs = jnp.concatenate([out_db[0], out_db[1]], axis=-1)              # (T, Bp, H) bf16
    outputs = jnp.transpose(outputs, (1, 0, 2)).astype(jnp.float32)[:B]     # (B, T, H)
    hidden = jnp.concatenate([hid_db[0], hid_db[1]], axis=-1)[None, :B]     # (1, B, H)
    return outputs, hidden


def init_params(key, vocab, hidden_size):
    Hh = hidden_size // 2
    ks = jax.random.split(key, 9)
    bound = 1.0 / np.sqrt(Hh)
    emb = 0.3 * jax.random.normal(ks[0], (vocab, hidden_size), jnp.float32)
    emb = emb.at[PAD_IDX].set(0.0)                   # padding_idx row is zero
    u = lambda kk, shape: jax.random.uniform(kk, shape, jnp.float32, -bound, bound)
    return dict(
        embedding=emb,
        w_ih_f=u(ks[1], (3 * Hh, hidden_size)), w_hh_f=u(ks[2], (3 * Hh, Hh)),
        b_ih_f=u(ks[3], (3 * Hh,)),             b_hh_f=u(ks[4], (3 * Hh,)),
        w_ih_b=u(ks[5], (3 * Hh, hidden_size)), w_hh_b=u(ks[6], (3 * Hh, Hh)),
        b_ih_b=u(ks[7], (3 * Hh,)),             b_hh_b=u(ks[8], (3 * Hh,)),
    )


def _ref_forward(input_seqs, input_lengths, params):
    # Pure-JAX reference of the same bidirectional packed GRU forward (f32).
    emb_table = params["embedding"]
    B, T = input_seqs.shape
    H = emb_table.shape[1]
    Hh = H // 2
    x = jnp.take(emb_table, input_seqs, axis=0)
    mask = (jnp.arange(T)[None, :] < input_lengths[:, None]).astype(jnp.float32)

    def cell(xt, h, w_ih, w_hh, b_ih, b_hh):
        gi = xt @ w_ih.T + b_ih
        gh = h @ w_hh.T + b_hh
        r = jax.nn.sigmoid(gi[:, :Hh] + gh[:, :Hh])
        z = jax.nn.sigmoid(gi[:, Hh:2 * Hh] + gh[:, Hh:2 * Hh])
        n = jnp.tanh(gi[:, 2 * Hh:] + r * gh[:, 2 * Hh:])
        return (1 - z) * n + z * h

    h_f = jnp.zeros((B, Hh)); out_f = jnp.zeros((B, T, Hh))
    for t in range(T):
        m = mask[:, t:t + 1]
        h_f = m * cell(x[:, t], h_f, params["w_ih_f"], params["w_hh_f"],
                       params["b_ih_f"], params["b_hh_f"]) + (1 - m) * h_f
        out_f = out_f.at[:, t].set(m * h_f)
    h_b = jnp.zeros((B, Hh)); out_b = jnp.zeros((B, T, Hh))
    for t in reversed(range(T)):
        m = mask[:, t:t + 1]
        h_b = m * cell(x[:, t], h_b, params["w_ih_b"], params["w_hh_b"],
                       params["b_ih_b"], params["b_hh_b"]) + (1 - m) * h_b
        out_b = out_b.at[:, t].set(m * h_b)
    outputs = jnp.concatenate([out_f, out_b], axis=-1)
    hidden = jnp.concatenate([h_f, h_b], axis=-1)[None]
    return outputs, hidden


if __name__ == "__main__":
    V, B, T, HIDDEN = 20, 2, 8, 32
    key = jax.random.PRNGKey(0)
    kp, ks = jax.random.split(key)
    params = init_params(kp, V, HIDDEN)

    lengths = jnp.array([8, 5], dtype=jnp.int32)     # sorted descending (pack_padded_sequence)
    seqs = jax.random.randint(ks, (B, T), 4, V, dtype=jnp.int32)
    valid = jnp.arange(T)[None, :] < lengths[:, None]
    seqs = jnp.where(valid, seqs, PAD_IDX)

    outputs, hidden = encoder_gru_forward(seqs, lengths, params)
    outputs, hidden = jax.block_until_ready((outputs, hidden))

    ref_out, ref_hid = _ref_forward(seqs, lengths, params)
    assert outputs.shape == (B, T, HIDDEN) and hidden.shape == (1, B, HIDDEN)
    assert np.allclose(np.asarray(outputs), np.asarray(ref_out), atol=5e-2, rtol=5e-2)
    assert np.allclose(np.asarray(hidden), np.asarray(ref_hid), atol=5e-2, rtol=5e-2)
    print("KERNEL_OK")
</pallas_src>

<mosaic_0001>
module attributes {stable_mosaic.version = 11 : i64} {
  func.func @_gru_chunk_kernel(%arg0: i32, %arg1: i32, %arg2: memref<1x32x32xbf16, #tpu.memory_space<vmem>>, %arg3: memref<4x8x1xf32, #tpu.memory_space<vmem>>, %arg4: memref<1x3x32x16xbf16, #tpu.memory_space<vmem>>, %arg5: memref<1x16x48xbf16, #tpu.memory_space<vmem>>, %arg6: memref<1x3x1x16xf32, #tpu.memory_space<vmem>>, %arg7: memref<1x1x16xf32, #tpu.memory_space<vmem>>, %arg8: memref<1x4x8x16xbf16, #tpu.memory_space<vmem>>, %arg9: memref<1x8x16xf32, #tpu.memory_space<vmem>>, %arg10: memref<3x4x8x16xbf16, #tpu.memory_space<vmem>>, %arg11: memref<8x16xf32, #tpu.memory_space<vmem>>) attributes {dimension_semantics = [#tpu.dimension_semantics<parallel>, #tpu.dimension_semantics<arbitrary>], iteration_bounds = array<i64: 2, 2>, scalar_prefetch = 0 : i64, scratch_operands = 2 : i64, tpu.core_type = #tpu.core_type<tc>, window_params = [{transform_indices = @transform_0, window_bounds = array<i64: 1, 32, 32>}, {transform_indices = @transform_1, window_bounds = array<i64: 4, 8, 1>}, {transform_indices = @transform_2, window_bounds = array<i64: 1, 3, 32, 16>}, {transform_indices = @transform_3, window_bounds = array<i64: 1, 16, 48>}, {transform_indices = @transform_4, window_bounds = array<i64: 1, 3, 1, 16>}, {transform_indices = @transform_5, window_bounds = array<i64: 1, 1, 16>}, {transform_indices = @transform_6, window_bounds = array<i64: 1, 4, 8, 16>}, {transform_indices = @transform_7, window_bounds = array<i64: 1, 8, 16>}]} {
    %c0_i32 = arith.constant 0 : i32
    %0 = arith.cmpi eq, %arg1, %c0_i32 : i32
    %1 = arith.extui %0 : i1 to i32
    %c0_i32_0 = arith.constant 0 : i32
    %2 = arith.cmpi ne, %1, %c0_i32_0 : i32
    scf.if %2 {
      %cst_172 = arith.constant 0.000000e+00 : f32
      %329 = vector.broadcast %cst_172 : f32 to vector<8x16xf32>
      %c0_173 = arith.constant 0 : index
      %c0_174 = arith.constant 0 : index
      %330 = vector.load %arg11[%c0_173, %c0_174] : memref<8x16xf32, #tpu.memory_space<vmem>>, vector<8x16xf32>
      tpu.vector_store %arg11[%c0_173, %c0_174], %329 {strides = array<i32>} : memref<8x16xf32, #tpu.memory_space<vmem>>, vector<8x16xf32>,
    } else {
    }
    %c0 = arith.constant 0 : index
    %c0_1 = arith.constant 0 : index
    %c0_2 = arith.constant 0 : index
    %3 = vector.load %arg2[%c0, %c0_1, %c0_2] : memref<1x32x32xbf16, #tpu.memory_space<vmem>>, vector<1x32x32xbf16>
    %4 = vector.shape_cast %3 : vector<1x32x32xbf16> to vector<32x32xbf16>
    %c0_3 = arith.constant 0 : index
    %c0_4 = arith.constant 0 : index
    %c0_5 = arith.constant 0 : index
    %c0_6 = arith.constant 0 : index
    %5 = vector.load %arg4[%c0_3, %c0_4, %c0_5, %c0_6] : memref<1x3x32x16xbf16, #tpu.memory_space<vmem>>, vector<1x1x32x16xbf16>
    %6 = vector.shape_cast %5 : vector<1x1x32x16xbf16> to vector<32x16xbf16>
    %cst = arith.constant dense<0.000000e+00> : vector<32x16xf32>
    %7 = tpu.matmul %4, %6, %cst {dimension_numbers = #tpu.dot_dimension_numbers<[1], [0], [0], [1], [0, 0, 1, 1], [], []>} : vector<32x32xbf16>, vector<32x16xbf16>, vector<32x16xf32> -> vector<32x16xf32>
    %c0_7 = arith.constant 0 : index
    %c0_8 = arith.constant 0 : index
    %c0_9 = arith.constant 0 : index
    %c0_10 = arith.constant 0 : index
    %8 = vector.load %arg6[%c0_7, %c0_8, %c0_9, %c0_10] : memref<1x3x1x16xf32, #tpu.memory_space<vmem>>, vector<1x1x1x16xf32>
    %9 = vector.shape_cast %8 : vector<1x1x1x16xf32> to vector<1x16xf32>
    %10 = vector.broadcast %9 : vector<1x16xf32> to vector<32x16xf32>
    %11 = arith.addf %7, %10 : vector<32x16xf32>
    %12 = vector.extract_strided_slice %11 {offsets = [0, 0], sizes = [8, 16], strides = [1, 1]} : vector<32x16xf32> to vector<8x16xf32>
    %13 = arith.truncf %12 : vector<8x16xf32> to vector<8x16xbf16>
    %c0_11 = arith.constant 0 : index
    %c0_12 = arith.constant 0 : index
    %c0_13 = arith.constant 0 : index
    %c0_14 = arith.constant 0 : index
    %14 = vector.load %arg10[%c0_11, %c0_12, %c0_13, %c0_14] : memref<3x4x8x16xbf16, #tpu.memory_space<vmem>>, vector<1x1x8x16xbf16>
    %15 = vector.shape_cast %14 : vector<1x1x8x16xbf16> to vector<8x16xbf16>
    %16 = vector.shape_cast %13 : vector<8x16xbf16> to vector<1x1x8x16xbf16>
    tpu.vector_store %arg10[%c0_11, %c0_12, %c0_13, %c0_14], %16 {strides = array<i32>} : memref<3x4x8x16xbf16, #tpu.memory_space<vmem>>, vector<1x1x8x16xbf16>,
    %17 = vector.extract_strided_slice %11 {offsets = [8, 0], sizes = [8, 16], strides = [1, 1]} : vector<32x16xf32> to vector<8x16xf32>
    %18 = arith.truncf %17 : vector<8x16xf32> to vector<8x16xbf16>
    %c0_15 = arith.constant 0 : index
    %c1 = arith.constant 1 : index
    %c0_16 = arith.constant 0 : index
    %c0_17 = arith.constant 0 : index
    %19 = vector.load %arg10[%c0_15, %c1, %c0_16, %c0_17] : memref<3x4x8x16xbf16, #tpu.memory_space<vmem>>, vector<1x1x8x16xbf16>
    %20 = vector.shape_cast %19 : vector<1x1x8x16xbf16> to vector<8x16xbf16>
    %21 = vector.shape_cast %18 : vector<8x16xbf16> to vector<1x1x8x16xbf16>
    tpu.vector_store %arg10[%c0_15, %c1, %c0_16, %c0_17], %21 {strides = array<i32>} : memref<3x4x8x16xbf16, #tpu.memory_space<vmem>>, vector<1x1x8x16xbf16>,
    %22 = vector.extract_strided_slice %11 {offsets = [16, 0], sizes = [8, 16], strides = [1, 1]} : vector<32x16xf32> to vector<8x16xf32>
    %23 = arith.truncf %22 : vector<8x16xf32> to vector<8x16xbf16>
    %c0_18 = arith.constant 0 : index
    %c2 = arith.constant 2 : index
    %c0_19 = arith.constant 0 : index
    %c0_20 = arith.constant 0 : index
    %24 = vector.load %arg10[%c0_18, %c2, %c0_19, %c0_20] : memref<3x4x8x16xbf16, #tpu.memory_space<vmem>>, vector<1x1x8x16xbf16>
    %25 = vector.shape_cast %24 : vector<1x1x8x16xbf16> to vector<8x16xbf16>
    %26 = vector.shape_cast %23 : vector<8x16xbf16> to vector<1x1x8x16xbf16>
    tpu.vector_store %arg10[%c0_18, %c2, %c0_19, %c0_20], %26 {strides = array<i32>} : memref<3x4x8x16xbf16, #tpu.memory_space<vmem>>, vector<1x1x8x16xbf16>,
    %27 = vector.extract_strided_slice %11 {offsets = [24, 0], sizes = [8, 16], strides = [1, 1]} : vector<32x16xf32> to vector<8x16xf32>
    %28 = arith.truncf %27 : vector<8x16xf32> to vector<8x16xbf16>
    %c0_21 = arith.constant 0 : index
    %c3 = arith.constant 3 : index
    %c0_22 = arith.constant 0 : index
    %c0_23 = arith.constant 0 : index
    %29 = vector.load %arg10[%c0_21, %c3, %c0_22, %c0_23] : memref<3x4x8x16xbf16, #tpu.memory_space<vmem>>, vector<1x1x8x16xbf16>
    %30 = vector.shape_cast %29 : vector<1x1x8x16xbf16> to vector<8x16xbf16>
    %31 = vector.shape_cast %28 : vector<8x16xbf16> to vector<1x1x8x16xbf16>
    tpu.vector_store %arg10[%c0_21, %c3, %c0_22, %c0_23], %31 {strides = array<i32>} : memref<3x4x8x16xbf16, #tpu.memory_space<vmem>>, vector<1x1x8x16xbf16>,
    %c0_24 = arith.constant 0 : index
    %c1_25 = arith.constant 1 : index
    %c0_26 = arith.constant 0 : index
    %c0_27 = arith.constant 0 : index
    %32 = vector.load %arg4[%c0_24, %c1_25, %c0_26, %c0_27] : memref<1x3x32x16xbf16, #tpu.memory_space<vmem>>, vector<1x1x32x16xbf16>
    %33 = vector.shape_cast %32 : vector<1x1x32x16xbf16> to vector<32x16xbf16>
    %cst_28 = arith.constant dense<0.000000e+00> : vector<32x16xf32>
    %34 = tpu.matmul %4, %33, %cst_28 {dimension_numbers = #tpu.dot_dimension_numbers<[1], [0], [0], [1], [0, 0, 1, 1], [], []>} : vector<32x32xbf16>, vector<32x16xbf16>, vector<32x16xf32> -> vector<32x16xf32>
    %c0_29 = arith.constant 0 : index
    %c1_30 = arith.constant 1 : index
    %c0_31 = arith.constant 0 : index
    %c0_32 = arith.constant 0 : index
    %35 = vector.load %arg6[%c0_29, %c1_30, %c0_31, %c0_32] : memref<1x3x1x16xf32, #tpu.memory_space<vmem>>, vector<1x1x1x16xf32>
    %36 = vector.shape_cast %35 : vector<1x1x1x16xf32> to vector<1x16xf32>
    %37 = vector.broadcast %36 : vector<1x16xf32> to vector<32x16xf32>
    %38 = arith.addf %34, %37 : vector<32x16xf32>
    %39 = vector.extract_strided_slice %38 {offsets = [0, 0], sizes = [8, 16], strides = [1, 1]} : vector<32x16xf32> to vector<8x16xf32>
    %40 = arith.truncf %39 : vector<8x16xf32> to vector<8x16xbf16>
    %c1_33 = arith.constant 1 : index
    %c0_34 = arith.constant 0 : index
    %c0_35 = arith.constant 0 : index
    %c0_36 = arith.constant 0 : index
    %41 = vector.load %arg10[%c1_33, %c0_34, %c0_35, %c0_36] : memref<3x4x8x16xbf16, #tpu.memory_space<vmem>>, vector<1x1x8x16xbf16>
    %42 = vector.shape_cast %41 : vector<1x1x8x16xbf16> to vector<8x16xbf16>
    %43 = vector.shape_cast %40 : vector<8x16xbf16> to vector<1x1x8x16xbf16>
    tpu.vector_store %arg10[%c1_33, %c0_34, %c0_35, %c0_36], %43 {strides = array<i32>} : memref<3x4x8x16xbf16, #tpu.memory_space<vmem>>, vector<1x1x8x16xbf16>,
    %44 = vector.extract_strided_slice %38 {offsets = [8, 0], sizes = [8, 16], strides = [1, 1]} : vector<32x16xf32> to vector<8x16xf32>
    %45 = arith.truncf %44 : vector<8x16xf32> to vector<8x16xbf16>
    %c1_37 = arith.constant 1 : index
    %c1_38 = arith.constant 1 : index
    %c0_39 = arith.constant 0 : index
    %c0_40 = arith.constant 0 : index
    %46 = vector.load %arg10[%c1_37, %c1_38, %c0_39, %c0_40] : memref<3x4x8x16xbf16, #tpu.memory_space<vmem>>, vector<1x1x8x16xbf16>
    %47 = vector.shape_cast %46 : vector<1x1x8x16xbf16> to vector<8x16xbf16>
    %48 = vector.shape_cast %45 : vector<8x16xbf16> to vector<1x1x8x16xbf16>
    tpu.vector_store %arg10[%c1_37, %c1_38, %c0_39, %c0_40], %48 {strides = array<i32>} : memref<3x4x8x16xbf16, #tpu.memory_space<vmem>>, vector<1x1x8x16xbf16>,
    %49 = vector.extract_strided_slice %38 {offsets = [16, 0], sizes = [8, 16], strides = [1, 1]} : vector<32x16xf32> to vector<8x16xf32>
    %50 = arith.truncf %49 : vector<8x16xf32> to vector<8x16xbf16>
    %c1_41 = arith.constant 1 : index
    %c2_42 = arith.constant 2 : index
    %c0_43 = arith.constant 0 : index
    %c0_44 = arith.constant 0 : index
    %51 = vector.load %arg10[%c1_41, %c2_42, %c0_43, %c0_44] : memref<3x4x8x16xbf16, #tpu.memory_space<vmem>>, vector<1x1x8x16xbf16>
    %52 = vector.shape_cast %51 : vector<1x1x8x16xbf16> to vector<8x16xbf16>
    %53 = vector.shape_cast %50 : vector<8x16xbf16> to vector<1x1x8x16xbf16>
    tpu.vector_store %arg10[%c1_41, %c2_42, %c0_43, %c0_44], %53 {strides = array<i32>} : memref<3x4x8x16xbf16, #tpu.memory_space<vmem>>, vector<1x1x8x16xbf16>,
    %54 = vector.extract_strided_slice %38 {offsets = [24, 0], sizes = [8, 16], strides = [1, 1]} : vector<32x16xf32> to vector<8x16xf32>
    %55 = arith.truncf %54 : vector<8x16xf32> to vector<8x16xbf16>
    %c1_45 = arith.constant 1 : index
    %c3_46 = arith.constant 3 : index
    %c0_47 = arith.constant 0 : index
    %c0_48 = arith.constant 0 : index
    %56 = vector.load %arg10[%c1_45, %c3_46, %c0_47, %c0_48] : memref<3x4x8x16xbf16, #tpu.memory_space<vmem>>, vector<1x1x8x16xbf16>
    %57 = vector.shape_cast %56 : vector<1x1x8x16xbf16> to vector<8x16xbf16>
    %58 = vector.shape_cast %55 : vector<8x16xbf16> to vector<1x1x8x16xbf16>
    tpu.vector_store %arg10[%c1_45, %c3_46, %c0_47, %c0_48], %58 {strides = array<i32>} : memref<3x4x8x16xbf16, #tpu.memory_space<vmem>>, vector<1x1x8x16xbf16>,
    %c0_49 = arith.constant 0 : index
    %c2_50 = arith.constant 2 : index
    %c0_51 = arith.constant 0 : index
    %c0_52 = arith.constant 0 : index
    %59 = vector.load %arg4[%c0_49, %c2_50, %c0_51, %c0_52] : memref<1x3x32x16xbf16, #tpu.memory_space<vmem>>, vector<1x1x32x16xbf16>
    %60 = vector.shape_cast %59 : vector<1x1x32x16xbf16> to vector<32x16xbf16>
    %cst_53 = arith.constant dense<0.000000e+00> : vector<32x16xf32>
    %61 = tpu.matmul %4, %60, %cst_53 {dimension_numbers = #tpu.dot_dimension_numbers<[1], [0], [0], [1], [0, 0, 1, 1], [], []>} : vector<32x32xbf16>, vector<32x16xbf16>, vector<32x16xf32> -> vector<32x16xf32>
    %c0_54 = arith.constant 0 : index
    %c2_55 = arith.constant 2 : index
    %c0_56 = arith.constant 0 : index
    %c0_57 = arith.constant 0 : index
    %62 = vector.load %arg6[%c0_54, %c2_55, %c0_56, %c0_57] : memref<1x3x1x16xf32, #tpu.memory_space<vmem>>, vector<1x1x1x16xf32>
    %63 = vector.shape_cast %62 : vector<1x1x1x16xf32> to vector<1x16xf32>
    %64 = vector.broadcast %63 : vector<1x16xf32> to vector<32x16xf32>
    %65 = arith.addf %61, %64 : vector<32x16xf32>
    %66 = vector.extract_strided_slice %65 {offsets = [0, 0], sizes = [8, 16], strides = [1, 1]} : vector<32x16xf32> to vector<8x16xf32>
    %67 = arith.truncf %66 : vector<8x16xf32> to vector<8x16xbf16>
    %c2_58 = arith.constant 2 : index
    %c0_59 = arith.constant 0 : index
    %c0_60 = arith.constant 0 : index
    %c0_61 = arith.constant 0 : index
    %68 = vector.load %arg10[%c2_58, %c0_59, %c0_60, %c0_61] : memref<3x4x8x16xbf16, #tpu.memory_space<vmem>>, vector<1x1x8x16xbf16>
    %69 = vector.shape_cast %68 : vector<1x1x8x16xbf16> to vector<8x16xbf16>
    %70 = vector.shape_cast %67 : vector<8x16xbf16> to vector<1x1x8x16xbf16>
    tpu.vector_store %arg10[%c2_58, %c0_59, %c0_60, %c0_61], %70 {strides = array<i32>} : memref<3x4x8x16xbf16, #tpu.memory_space<vmem>>, vector<1x1x8x16xbf16>,
    %71 = vector.extract_strided_slice %65 {offsets = [8, 0], sizes = [8, 16], strides = [1, 1]} : vector<32x16xf32> to vector<8x16xf32>
    %72 = arith.truncf %71 : vector<8x16xf32> to vector<8x16xbf16>
    %c2_62 = arith.constant 2 : index
    %c1_63 = arith.constant 1 : index
    %c0_64 = arith.constant 0 : index
    %c0_65 = arith.constant 0 : index
    %73 = vector.load %arg10[%c2_62, %c1_63, %c0_64, %c0_65] : memref<3x4x8x16xbf16, #tpu.memory_space<vmem>>, vector<1x1x8x16xbf16>
    %74 = vector.shape_cast %73 : vector<1x1x8x16xbf16> to vector<8x16xbf16>
    %75 = vector.shape_cast %72 : vector<8x16xbf16> to vector<1x1x8x16xbf16>
    tpu.vector_store %arg10[%c2_62, %c1_63, %c0_64, %c0_65], %75 {strides = array<i32>} : memref<3x4x8x16xbf16, #tpu.memory_space<vmem>>, vector<1x1x8x16xbf16>,
    %76 = vector.extract_strided_slice %65 {offsets = [16, 0], sizes = [8, 16], strides = [1, 1]} : vector<32x16xf32> to vector<8x16xf32>
    %77 = arith.truncf %76 : vector<8x16xf32> to vector<8x16xbf16>
    %c2_66 = arith.constant 2 : index
    %c2_67 = arith.constant 2 : index
    %c0_68 = arith.constant 0 : index
    %c0_69 = arith.constant 0 : index
    %78 = vector.load %arg10[%c2_66, %c2_67, %c0_68, %c0_69] : memref<3x4x8x16xbf16, #tpu.memory_space<vmem>>, vector<1x1x8x16xbf16>
    %79 = vector.shape_cast %78 : vector<1x1x8x16xbf16> to vector<8x16xbf16>
    %80 = vector.shape_cast %77 : vector<8x16xbf16> to vector<1x1x8x16xbf16>
    tpu.vector_store %arg10[%c2_66, %c2_67, %c0_68, %c0_69], %80 {strides = array<i32>} : memref<3x4x8x16xbf16, #tpu.memory_space<vmem>>, vector<1x1x8x16xbf16>,
    %81 = vector.extract_strided_slice %65 {offsets = [24, 0], sizes = [8, 16], strides = [1, 1]} : vector<32x16xf32> to vector<8x16xf32>
    %82 = arith.truncf %81 : vector<8x16xf32> to vector<8x16xbf16>
    %c2_70 = arith.constant 2 : index
    %c3_71 = arith.constant 3 : index
    %c0_72 = arith.constant 0 : index
    %c0_73 = arith.constant 0 : index
    %83 = vector.load %arg10[%c2_70, %c3_71, %c0_72, %c0_73] : memref<3x4x8x16xbf16, #tpu.memory_space<vmem>>, vector<1x1x8x16xbf16>
    %84 = vector.shape_cast %83 : vector<1x1x8x16xbf16> to vector<8x16xbf16>
    %85 = vector.shape_cast %82 : vector<8x16xbf16> to vector<1x1x8x16xbf16>
    tpu.vector_store %arg10[%c2_70, %c3_71, %c0_72, %c0_73], %85 {strides = array<i32>} : memref<3x4x8x16xbf16, #tpu.memory_space<vmem>>, vector<1x1x8x16xbf16>,
    %c0_74 = arith.constant 0 : index
    %c0_75 = arith.constant 0 : index
    %c0_76 = arith.constant 0 : index
    %86 = vector.load %arg5[%c0_74, %c0_75, %c0_76] : memref<1x16x48xbf16, #tpu.memory_space<vmem>>, vector<1x16x48xbf16>
    %87 = vector.shape_cast %86 : vector<1x16x48xbf16> to vector<16x48xbf16>
    %c0_77 = arith.constant 0 : index
    %c0_78 = arith.constant 0 : index
    %c0_79 = arith.constant 0 : index
    %88 = vector.load %arg7[%c0_77, %c0_78, %c0_79] : memref<1x1x16xf32, #tpu.memory_space<vmem>>, vector<1x1x16xf32>
    %89 = vector.shape_cast %88 : vector<1x1x16xf32> to vector<1x16xf32>
    %90 = vector.shape_cast %89 : vector<1x16xf32> to vector<1x16xf32>
    %91 = vector.broadcast %90 : vector<1x16xf32> to vector<8x16xf32>
    %c0_80 = arith.constant 0 : index
    %c0_81 = arith.constant 0 : index
    %92 = vector.load %arg11[%c0_80, %c0_81] : memref<8x16xf32, #tpu.memory_space<vmem>>, vector<8x16xf32>
    %c0_i32_82 = arith.constant 0 : i32
    %c0_i32_83 = arith.constant 0 : i32
    %93 = arith.cmpi eq, %arg0, %c0_i32_83 : i32
    %c3_i32 = arith.constant 3 : i32
    %94 = arith.subi %c3_i32, %c0_i32_82 : i32
    %95 = arith.select %93, %c0_i32_82, %94 : i32
    %c0_84 = arith.constant 0 : index
    %96 = arith.index_cast %95 : i32 to index
    %c0_85 = arith.constant 0 : index
    %c0_86 = arith.constant 0 : index
    %97 = vector.load %arg10[%c0_84, %96, %c0_85, %c0_86] : memref<3x4x8x16xbf16, #tpu.memory_space<vmem>>, vector<1x1x8x16xbf16>
    %98 = vector.shape_cast %97 : vector<1x1x8x16xbf16> to vector<8x16xbf16>
    %99 = arith.extf %98 : vector<8x16xbf16> to vector<8x16xf32>
    %c1_87 = arith.constant 1 : index
    %100 = arith.index_cast %95 : i32 to index
    %c0_88 = arith.constant 0 : index
    %c0_89 = arith.constant 0 : index
    %101 = vector.load %arg10[%c1_87, %100, %c0_88, %c0_89] : memref<3x4x8x16xbf16, #tpu.memory_space<vmem>>, vector<1x1x8x16xbf16>
    %102 = vector.shape_cast %101 : vector<1x1x8x16xbf16> to vector<8x16xbf16>
    %103 = arith.extf %102 : vector<8x16xbf16> to vector<8x16xf32>
    %c2_90 = arith.constant 2 : index
    %104 = arith.index_cast %95 : i32 to index
    %c0_91 = arith.constant 0 : index
    %c0_92 = arith.constant 0 : index
    %105 = vector.load %arg10[%c2_90, %104, %c0_91, %c0_92] : memref<3x4x8x16xbf16, #tpu.memory_space<vmem>>, vector<1x1x8x16xbf16>
    %106 = vector.shape_cast %105 : vector<1x1x8x16xbf16> to vector<8x16xbf16>
    %107 = arith.extf %106 : vector<8x16xbf16> to vector<8x16xf32>
    %108 = arith.index_cast %95 : i32 to index
    %c0_93 = arith.constant 0 : index
    %c0_94 = arith.constant 0 : index
    %109 = vector.load %arg3[%108, %c0_93, %c0_94] : memref<4x8x1xf32, #tpu.memory_space<vmem>>, vector<1x8x1xf32>
    %110 = vector.shape_cast %109 : vector<1x8x1xf32> to vector<8x1xf32>
    %111 = arith.truncf %92 : vector<8x16xf32> to vector<8x16xbf16>
    %cst_95 = arith.constant dense<0.000000e+00> : vector<8x48xf32>
    %112 = tpu.matmul %111, %87, %cst_95 {dimension_numbers = #tpu.dot_dimension_numbers<[1], [0], [0], [1], [0, 0, 1, 1], [], []>} : vector<8x16xbf16>, vector<16x48xbf16>, vector<8x48xf32> -> vector<8x48xf32>
    %113 = vector.extract_strided_slice %112 {offsets = [0, 0], sizes = [8, 16], strides = [1, 1]} : vector<8x48xf32> to vector<8x16xf32>
    %114 = arith.addf %99, %113 : vector<8x16xf32>
    %115 = arith.negf %114 : vector<8x16xf32>
    %116 = math.exp %115 : vector<8x16xf32>
    %cst_96 = arith.constant 1.000000e+00 : f32
    %117 = vector.broadcast %cst_96 : f32 to vector<8x16xf32>
    %118 = arith.addf %117, %116 : vector<8x16xf32>
    %119 = arith.divf %117, %118 : vector<8x16xf32>
    %120 = vector.extract_strided_slice %112 {offsets = [0, 16], sizes = [8, 16], strides = [1, 1]} : vector<8x48xf32> to vector<8x16xf32>
    %121 = arith.addf %103, %120 : vector<8x16xf32>
    %122 = arith.negf %121 : vector<8x16xf32>
    %123 = math.exp %122 : vector<8x16xf32>
    %cst_97 = arith.constant 1.000000e+00 : f32
    %124 = vector.broadcast %cst_97 : f32 to vector<8x16xf32>
    %125 = arith.addf %124, %123 : vector<8x16xf32>
    %126 = arith.divf %124, %125 : vector<8x16xf32>
    %127 = vector.extract_strided_slice %112 {offsets = [0, 32], sizes = [8, 16], strides = [1, 1]} : vector<8x48xf32> to vector<8x16xf32>
    %128 = arith.addf %127, %91 : vector<8x16xf32>
    %129 = arith.mulf %119, %128 : vector<8x16xf32>
    %130 = arith.addf %107, %129 : vector<8x16xf32>
    %131 = math.tanh %130 : vector<8x16xf32>
    %cst_98 = arith.constant 1.000000e+00 : f32
    %132 = vector.broadcast %cst_98 : f32 to vector<8x16xf32>
    %133 = arith.subf %132, %126 : vector<8x16xf32>
    %134 = arith.mulf %133, %131 : vector<8x16xf32>
    %135 = arith.mulf %126, %92 : vector<8x16xf32>
    %136 = arith.addf %134, %135 : vector<8x16xf32>
    %137 = vector.broadcast %110 : vector<8x1xf32> to vector<8x16xf32>
    %138 = arith.mulf %137, %136 : vector<8x16xf32>
    %cst_99 = arith.constant 1.000000e+00 : f32
    %139 = vector.broadcast %cst_99 : f32 to vector<8x1xf32>
    %140 = arith.subf %139, %110 : vector<8x1xf32>
    %141 = vector.broadcast %140 : vector<8x1xf32> to vector<8x16xf32>
    %142 = arith.mulf %141, %92 : vector<8x16xf32>
    %143 = arith.addf %138, %142 : vector<8x16xf32>
    %144 = vector.broadcast %110 : vector<8x1xf32> to vector<8x16xf32>
    %145 = arith.mulf %144, %143 : vector<8x16xf32>
    %146 = arith.truncf %145 : vector<8x16xf32> to vector<8x16xbf16>
    %c0_100 = arith.constant 0 : index
    %147 = arith.index_cast %95 : i32 to index
    %c0_101 = arith.constant 0 : index
    %c0_102 = arith.constant 0 : index
    %148 = vector.load %arg8[%c0_100, %147, %c0_101, %c0_102] : memref<1x4x8x16xbf16, #tpu.memory_space<vmem>>, vector<1x1x8x16xbf16>
    %149 = vector.shape_cast %148 : vector<1x1x8x16xbf16> to vector<8x16xbf16>
    %150 = vector.shape_cast %146 : vector<8x16xbf16> to vector<1x1x8x16xbf16>
    tpu.vector_store %arg8[%c0_100, %147, %c0_101, %c0_102], %150 {strides = array<i32>} : memref<1x4x8x16xbf16, #tpu.memory_space<vmem>>, vector<1x1x8x16xbf16>,
    %c1_i32 = arith.constant 1 : i32
    %c0_i32_103 = arith.constant 0 : i32
    %151 = arith.cmpi eq, %arg0, %c0_i32_103 : i32
    %c3_i32_104 = arith.constant 3 : i32
    %152 = arith.subi %c3_i32_104, %c1_i32 : i32
    %153 = arith.select %151, %c1_i32, %152 : i32
    %c0_105 = arith.constant 0 : index
    %154 = arith.index_cast %153 : i32 to index
    %c0_106 = arith.constant 0 : index
    %c0_107 = arith.constant 0 : index
    %155 = vector.load %arg10[%c0_105, %154, %c0_106, %c0_107] : memref<3x4x8x16xbf16, #tpu.memory_space<vmem>>, vector<1x1x8x16xbf16>
    %156 = vector.shape_cast %155 : vector<1x1x8x16xbf16> to vector<8x16xbf16>
    %157 = arith.extf %156 : vector<8x16xbf16> to vector<8x16xf32>
    %c1_108 = arith.constant 1 : index
    %158 = arith.index_cast %153 : i32 to index
    %c0_109 = arith.constant 0 : index
    %c0_110 = arith.constant 0 : index
    %159 = vector.load %arg10[%c1_108, %158, %c0_109, %c0_110] : memref<3x4x8x16xbf16, #tpu.memory_space<vmem>>, vector<1x1x8x16xbf16>
    %160 = vector.shape_cast %159 : vector<1x1x8x16xbf16> to vector<8x16xbf16>
    %161 = arith.extf %160 : vector<8x16xbf16> to vector<8x16xf32>
    %c2_111 = arith.constant 2 : index
    %162 = arith.index_cast %153 : i32 to index
    %c0_112 = arith.constant 0 : index
    %c0_113 = arith.constant 0 : index
    %163 = vector.load %arg10[%c2_111, %162, %c0_112, %c0_113] : memref<3x4x8x16xbf16, #tpu.memory_space<vmem>>, vector<1x1x8x16xbf16>
    %164 = vector.shape_cast %163 : vector<1x1x8x16xbf16> to vector<8x16xbf16>
    %165 = arith.extf %164 : vector<8x16xbf16> to vector<8x16xf32>
    %166 = arith.index_cast %153 : i32 to index
    %c0_114 = arith.constant 0 : index
    %c0_115 = arith.constant 0 : index
    %167 = vector.load %arg3[%166, %c0_114, %c0_115] : memref<4x8x1xf32, #tpu.memory_space<vmem>>, vector<1x8x1xf32>
    %168 = vector.shape_cast %167 : vector<1x8x1xf32> to vector<8x1xf32>
    %169 = arith.truncf %143 : vector<8x16xf32> to vector<8x16xbf16>
    %cst_116 = arith.constant dense<0.000000e+00> : vector<8x48xf32>
    %170 = tpu.matmul %169, %87, %cst_116 {dimension_numbers = #tpu.dot_dimension_numbers<[1], [0], [0], [1], [0, 0, 1, 1], [], []>} : vector<8x16xbf16>, vector<16x48xbf16>, vector<8x48xf32> -> vector<8x48xf32>
    %171 = vector.extract_strided_slice %170 {offsets = [0, 0], sizes = [8, 16], strides = [1, 1]} : vector<8x48xf32> to vector<8x16xf32>
    %172 = arith.addf %157, %171 : vector<8x16xf32>
    %173 = arith.negf %172 : vector<8x16xf32>
    %174 = math.exp %173 : vector<8x16xf32>
    %cst_117 = arith.constant 1.000000e+00 : f32
    %175 = vector.broadcast %cst_117 : f32 to vector<8x16xf32>
    %176 = arith.addf %175, %174 : vector<8x16xf32>
    %177 = arith.divf %175, %176 : vector<8x16xf32>
    %178 = vector.extract_strided_slice %170 {offsets = [0, 16], sizes = [8, 16], strides = [1, 1]} : vector<8x48xf32> to vector<8x16xf32>
    %179 = arith.addf %161, %178 : vector<8x16xf32>
    %180 = arith.negf %179 : vector<8x16xf32>
    %181 = math.exp %180 : vector<8x16xf32>
    %cst_118 = arith.constant 1.000000e+00 : f32
    %182 = vector.broadcast %cst_118 : f32 to vector<8x16xf32>
    %183 = arith.addf %182, %181 : vector<8x16xf32>
    %184 = arith.divf %182, %183 : vector<8x16xf32>
    %185 = vector.extract_strided_slice %170 {offsets = [0, 32], sizes = [8, 16], strides = [1, 1]} : vector<8x48xf32> to vector<8x16xf32>
    %186 = arith.addf %185, %91 : vector<8x16xf32>
    %187 = arith.mulf %177, %186 : vector<8x16xf32>
    %188 = arith.addf %165, %187 : vector<8x16xf32>
    %189 = math.tanh %188 : vector<8x16xf32>
    %cst_119 = arith.constant 1.000000e+00 : f32
    %190 = vector.broadcast %cst_119 : f32 to vector<8x16xf32>
    %191 = arith.subf %190, %184 : vector<8x16xf32>
    %192 = arith.mulf %191, %189 : vector<8x16xf32>
    %193 = arith.mulf %184, %143 : vector<8x16xf32>
    %194 = arith.addf %192, %193 : vector<8x16xf32>
    %195 = vector.broadcast %168 : vector<8x1xf32> to vector<8x16xf32>
    %196 = arith.mulf %195, %194 : vector<8x16xf32>
    %cst_120 = arith.constant 1.000000e+00 : f32
    %197 = vector.broadcast %cst_120 : f32 to vector<8x1xf32>
    %198 = arith.subf %197, %168 : vector<8x1xf32>
    %199 = vector.broadcast %198 : vector<8x1xf32> to vector<8x16xf32>
    %200 = arith.mulf %199, %143 : vector<8x16xf32>
    %201 = arith.addf %196, %200 : vector<8x16xf32>
    %202 = vector.broadcast %168 : vector<8x1xf32> to vector<8x16xf32>
    %203 = arith.mulf %202, %201 : vector<8x16xf32>
    %204 = arith.truncf %203 : vector<8x16xf32> to vector<8x16xbf16>
    %c0_121 = arith.constant 0 : index
    %205 = arith.index_cast %153 : i32 to index
    %c0_122 = arith.constant 0 : index
    %c0_123 = arith.constant 0 : index
    %206 = vector.load %arg8[%c0_121, %205, %c0_122, %c0_123] : memref<1x4x8x16xbf16, #tpu.memory_space<vmem>>, vector<1x1x8x16xbf16>
    %207 = vector.shape_cast %206 : vector<1x1x8x16xbf16> to vector<8x16xbf16>
    %208 = vector.shape_cast %204 : vector<8x16xbf16> to vector<1x1x8x16xbf16>
    tpu.vector_store %arg8[%c0_121, %205, %c0_122, %c0_123], %208 {strides = array<i32>} : memref<1x4x8x16xbf16, #tpu.memory_space<vmem>>, vector<1x1x8x16xbf16>,
    %c2_i32 = arith.constant 2 : i32
    %c0_i32_124 = arith.constant 0 : i32
    %209 = arith.cmpi eq, %arg0, %c0_i32_124 : i32
    %c3_i32_125 = arith.constant 3 : i32
    %210 = arith.subi %c3_i32_125, %c2_i32 : i32
    %211 = arith.select %209, %c2_i32, %210 : i32
    %c0_126 = arith.constant 0 : index
    %212 = arith.index_cast %211 : i32 to index
    %c0_127 = arith.constant 0 : index
    %c0_128 = arith.constant 0 : index
    %213 = vector.load %arg10[%c0_126, %212, %c0_127, %c0_128] : memref<3x4x8x16xbf16, #tpu.memory_space<vmem>>, vector<1x1x8x16xbf16>
    %214 = vector.shape_cast %213 : vector<1x1x8x16xbf16> to vector<8x16xbf16>
    %215 = arith.extf %214 : vector<8x16xbf16> to vector<8x16xf32>
    %c1_129 = arith.constant 1 : index
    %216 = arith.index_cast %211 : i32 to index
    %c0_130 = arith.constant 0 : index
    %c0_131 = arith.constant 0 : index
    %217 = vector.load %arg10[%c1_129, %216, %c0_130, %c0_131] : memref<3x4x8x16xbf16, #tpu.memory_space<vmem>>, vector<1x1x8x16xbf16>
    %218 = vector.shape_cast %217 : vector<1x1x8x16xbf16> to vector<8x16xbf16>
    %219 = arith.extf %218 : vector<8x16xbf16> to vector<8x16xf32>
    %c2_132 = arith.constant 2 : index
    %220 = arith.index_cast %211 : i32 to index
    %c0_133 = arith.constant 0 : index
    %c0_134 = arith.constant 0 : index
    %221 = vector.load %arg10[%c2_132, %220, %c0_133, %c0_134] : memref<3x4x8x16xbf16, #tpu.memory_space<vmem>>, vector<1x1x8x16xbf16>
    %222 = vector.shape_cast %221 : vector<1x1x8x16xbf16> to vector<8x16xbf16>
    %223 = arith.extf %222 : vector<8x16xbf16> to vector<8x16xf32>
    %224 = arith.index_cast %211 : i32 to index
    %c0_135 = arith.constant 0 : index
    %c0_136 = arith.constant 0 : index
    %225 = vector.load %arg3[%224, %c0_135, %c0_136] : memref<4x8x1xf32, #tpu.memory_space<vmem>>, vector<1x8x1xf32>
    %226 = vector.shape_cast %225 : vector<1x8x1xf32> to vector<8x1xf32>
    %227 = arith.truncf %201 : vector<8x16xf32> to vector<8x16xbf16>
    %cst_137 = arith.constant dense<0.000000e+00> : vector<8x48xf32>
    %228 = tpu.matmul %227, %87, %cst_137 {dimension_numbers = #tpu.dot_dimension_numbers<[1], [0], [0], [1], [0, 0, 1, 1], [], []>} : vector<8x16xbf16>, vector<16x48xbf16>, vector<8x48xf32> -> vector<8x48xf32>
    %229 = vector.extract_strided_slice %228 {offsets = [0, 0], sizes = [8, 16], strides = [1, 1]} : vector<8x48xf32> to vector<8x16xf32>
    %230 = arith.addf %215, %229 : vector<8x16xf32>
    %231 = arith.negf %230 : vector<8x16xf32>
    %232 = math.exp %231 : vector<8x16xf32>
    %cst_138 = arith.constant 1.000000e+00 : f32
    %233 = vector.broadcast %cst_138 : f32 to vector<8x16xf32>
    %234 = arith.addf %233, %232 : vector<8x16xf32>
    %235 = arith.divf %233, %234 : vector<8x16xf32>
    %236 = vector.extract_strided_slice %228 {offsets = [0, 16], sizes = [8, 16], strides = [1, 1]} : vector<8x48xf32> to vector<8x16xf32>
    %237 = arith.addf %219, %236 : vector<8x16xf32>
    %238 = arith.negf %237 : vector<8x16xf32>
    %239 = math.exp %238 : vector<8x16xf32>
    %cst_139 = arith.constant 1.000000e+00 : f32
    %240 = vector.broadcast %cst_139 : f32 to vector<8x16xf32>
    %241 = arith.addf %240, %239 : vector<8x16xf32>
    %242 = arith.divf %240, %241 : vector<8x16xf32>
    %243 = vector.extract_strided_slice %228 {offsets = [0, 32], sizes = [8, 16], strides = [1, 1]} : vector<8x48xf32> to vector<8x16xf32>
    %244 = arith.addf %243, %91 : vector<8x16xf32>
    %245 = arith.mulf %235, %244 : vector<8x16xf32>
    %246 = arith.addf %223, %245 : vector<8x16xf32>
    %247 = math.tanh %246 : vector<8x16xf32>
    %cst_140 = arith.constant 1.000000e+00 : f32
    %248 = vector.broadcast %cst_140 : f32 to vector<8x16xf32>
    %249 = arith.subf %248, %242 : vector<8x16xf32>
    %250 = arith.mulf %249, %247 : vector<8x16xf32>
    %251 = arith.mulf %242, %201 : vector<8x16xf32>
    %252 = arith.addf %250, %251 : vector<8x16xf32>
    %253 = vector.broadcast %226 : vector<8x1xf32> to vector<8x16xf32>
    %254 = arith.mulf %253, %252 : vector<8x16xf32>
    %cst_141 = arith.constant 1.000000e+00 : f32
    %255 = vector.broadcast %cst_141 : f32 to vector<8x1xf32>
    %256 = arith.subf %255, %226 : vector<8x1xf32>
    %257 = vector.broadcast %256 : vector<8x1xf32> to vector<8x16xf32>
    %258 = arith.mulf %257, %201 : vector<8x16xf32>
    %259 = arith.addf %254, %258 : vector<8x16xf32>
    %260 = vector.broadcast %226 : vector<8x1xf32> to vector<8x16xf32>
    %261 = arith.mulf %260, %259 : vector<8x16xf32>
    %262 = arith.truncf %261 : vector<8x16xf32> to vector<8x16xbf16>
    %c0_142 = arith.constant 0 : index
    %263 = arith.index_cast %211 : i32 to index
    %c0_143 = arith.constant 0 : index
    %c0_144 = arith.constant 0 : index
    %264 = vector.load %arg8[%c0_142, %263, %c0_143, %c0_144] : memref<1x4x8x16xbf16, #tpu.memory_space<vmem>>, vector<1x1x8x16xbf16>
    %265 = vector.shape_cast %264 : vector<1x1x8x16xbf16> to vector<8x16xbf16>
    %266 = vector.shape_cast %262 : vector<8x16xbf16> to vector<1x1x8x16xbf16>
    tpu.vector_store %arg8[%c0_142, %263, %c0_143, %c0_144], %266 {strides = array<i32>} : memref<1x4x8x16xbf16, #tpu.memory_space<vmem>>, vector<1x1x8x16xbf16>,
    %c3_i32_145 = arith.constant 3 : i32
    %c0_i32_146 = arith.constant 0 : i32
    %267 = arith.cmpi eq, %arg0, %c0_i32_146 : i32
    %c3_i32_147 = arith.constant 3 : i32
    %268 = arith.subi %c3_i32_147, %c3_i32_145 : i32
    %269 = arith.select %267, %c3_i32_145, %268 : i32
    %c0_148 = arith.constant 0 : index
    %270 = arith.index_cast %269 : i32 to index
    %c0_149 = arith.constant 0 : index
    %c0_150 = arith.constant 0 : index
    %271 = vector.load %arg10[%c0_148, %270, %c0_149, %c0_150] : memref<3x4x8x16xbf16, #tpu.memory_space<vmem>>, vector<1x1x8x16xbf16>
    %272 = vector.shape_cast %271 : vector<1x1x8x16xbf16> to vector<8x16xbf16>
    %273 = arith.extf %272 : vector<8x16xbf16> to vector<8x16xf32>
    %c1_151 = arith.constant 1 : index
    %274 = arith.index_cast %269 : i32 to index
    %c0_152 = arith.constant 0 : index
    %c0_153 = arith.constant 0 : index
    %275 = vector.load %arg10[%c1_151, %274, %c0_152, %c0_153] : memref<3x4x8x16xbf16, #tpu.memory_space<vmem>>, vector<1x1x8x16xbf16>
    %276 = vector.shape_cast %275 : vector<1x1x8x16xbf16> to vector<8x16xbf16>
    %277 = arith.extf %276 : vector<8x16xbf16> to vector<8x16xf32>
    %c2_154 = arith.constant 2 : index
    %278 = arith.index_cast %269 : i32 to index
    %c0_155 = arith.constant 0 : index
    %c0_156 = arith.constant 0 : index
    %279 = vector.load %arg10[%c2_154, %278, %c0_155, %c0_156] : memref<3x4x8x16xbf16, #tpu.memory_space<vmem>>, vector<1x1x8x16xbf16>
    %280 = vector.shape_cast %279 : vector<1x1x8x16xbf16> to vector<8x16xbf16>
    %281 = arith.extf %280 : vector<8x16xbf16> to vector<8x16xf32>
    %282 = arith.index_cast %269 : i32 to index
    %c0_157 = arith.constant 0 : index
    %c0_158 = arith.constant 0 : index
    %283 = vector.load %arg3[%282, %c0_157, %c0_158] : memref<4x8x1xf32, #tpu.memory_space<vmem>>, vector<1x8x1xf32>
    %284 = vector.shape_cast %283 : vector<1x8x1xf32> to vector<8x1xf32>
    %285 = arith.truncf %259 : vector<8x16xf32> to vector<8x16xbf16>
    %cst_159 = arith.constant dense<0.000000e+00> : vector<8x48xf32>
    %286 = tpu.matmul %285, %87, %cst_159 {dimension_numbers = #tpu.dot_dimension_numbers<[1], [0], [0], [1], [0, 0, 1, 1], [], []>} : vector<8x16xbf16>, vector<16x48xbf16>, vector<8x48xf32> -> vector<8x48xf32>
    %287 = vector.extract_strided_slice %286 {offsets = [0, 0], sizes = [8, 16], strides = [1, 1]} : vector<8x48xf32> to vector<8x16xf32>
    %288 = arith.addf %273, %287 : vector<8x16xf32>
    %289 = arith.negf %288 : vector<8x16xf32>
    %290 = math.exp %289 : vector<8x16xf32>
    %cst_160 = arith.constant 1.000000e+00 : f32
    %291 = vector.broadcast %cst_160 : f32 to vector<8x16xf32>
    %292 = arith.addf %291, %290 : vector<8x16xf32>
    %293 = arith.divf %291, %292 : vector<8x16xf32>
    %294 = vector.extract_strided_slice %286 {offsets = [0, 16], sizes = [8, 16], strides = [1, 1]} : vector<8x48xf32> to vector<8x16xf32>
    %295 = arith.addf %277, %294 : vector<8x16xf32>
    %296 = arith.negf %295 : vector<8x16xf32>
    %297 = math.exp %296 : vector<8x16xf32>
    %cst_161 = arith.constant 1.000000e+00 : f32
    %298 = vector.broadcast %cst_161 : f32 to vector<8x16xf32>
    %299 = arith.addf %298, %297 : vector<8x16xf32>
    %300 = arith.divf %298, %299 : vector<8x16xf32>
    %301 = vector.extract_strided_slice %286 {offsets = [0, 32], sizes = [8, 16], strides = [1, 1]} : vector<8x48xf32> to vector<8x16xf32>
    %302 = arith.addf %301, %91 : vector<8x16xf32>
    %303 = arith.mulf %293, %302 : vector<8x16xf32>
    %304 = arith.addf %281, %303 : vector<8x16xf32>
    %305 = math.tanh %304 : vector<8x16xf32>
    %cst_162 = arith.constant 1.000000e+00 : f32
    %306 = vector.broadcast %cst_162 : f32 to vector<8x16xf32>
    %307 = arith.subf %306, %300 : vector<8x16xf32>
    %308 = arith.mulf %307, %305 : vector<8x16xf32>
    %309 = arith.mulf %300, %259 : vector<8x16xf32>
    %310 = arith.addf %308, %309 : vector<8x16xf32>
    %311 = vector.broadcast %284 : vector<8x1xf32> to vector<8x16xf32>
    %312 = arith.mulf %311, %310 : vector<8x16xf32>
    %cst_163 = arith.constant 1.000000e+00 : f32
    %313 = vector.broadcast %cst_163 : f32 to vector<8x1xf32>
    %314 = arith.subf %313, %284 : vector<8x1xf32>
    %315 = vector.broadcast %314 : vector<8x1xf32> to vector<8x16xf32>
    %316 = arith.mulf %315, %259 : vector<8x16xf32>
    %317 = arith.addf %312, %316 : vector<8x16xf32>
    %318 = vector.broadcast %284 : vector<8x1xf32> to vector<8x16xf32>
    %319 = arith.mulf %318, %317 : vector<8x16xf32>
    %320 = arith.truncf %319 : vector<8x16xf32> to vector<8x16xbf16>
    %c0_164 = arith.constant 0 : index
    %321 = arith.index_cast %269 : i32 to index
    %c0_165 = arith.constant 0 : index
    %c0_166 = arith.constant 0 : index
    %322 = vector.load %arg8[%c0_164, %321, %c0_165, %c0_166] : memref<1x4x8x16xbf16, #tpu.memory_space<vmem>>, vector<1x1x8x16xbf16>
    %323 = vector.shape_cast %322 : vector<1x1x8x16xbf16> to vector<8x16xbf16>
    %324 = vector.shape_cast %320 : vector<8x16xbf16> to vector<1x1x8x16xbf16>
    tpu.vector_store %arg8[%c0_164, %321, %c0_165, %c0_166], %324 {strides = array<i32>} : memref<1x4x8x16xbf16, #tpu.memory_space<vmem>>, vector<1x1x8x16xbf16>,
    %c4_i32 = arith.constant 4 : i32
    %c0_167 = arith.constant 0 : index
    %c0_168 = arith.constant 0 : index
    %325 = vector.load %arg11[%c0_167, %c0_168] : memref<8x16xf32, #tpu.memory_space<vmem>>, vector<8x16xf32>
    tpu.vector_store %arg11[%c0_167, %c0_168], %317 {strides = array<i32>} : memref<8x16xf32, #tpu.memory_space<vmem>>, vector<8x16xf32>,
    %c0_169 = arith.constant 0 : index
    %c0_170 = arith.constant 0 : index
    %c0_171 = arith.constant 0 : index
    %326 = vector.load %arg9[%c0_169, %c0_170, %c0_171] : memref<1x8x16xf32, #tpu.memory_space<vmem>>, vector<1x8x16xf32>
    %327 = vector.shape_cast %326 : vector<1x8x16xf32> to vector<8x16xf32>
    %328 = vector.shape_cast %317 : vector<8x16xf32> to vector<1x8x16xf32>
    tpu.vector_store %arg9[%c0_169, %c0_170, %c0_171], %328 {strides = array<i32>} : memref<1x8x16xf32, #tpu.memory_space<vmem>>, vector<1x8x16xf32>,
    return
  }
  func.func @transform_0(%arg0: i32, %arg1: i32) -> (i32, i32, i32) {
    %c2_i32 = arith.constant 2 : i32
    %0 = arith.muli %c2_i32, %arg1 : i32
    %c1_i32 = arith.constant 1 : i32
    %1 = arith.subi %c1_i32, %0 : i32
    %2 = arith.muli %arg0, %1 : i32
    %3 = arith.addi %arg1, %2 : i32
    %c0_i32 = arith.constant 0 : i32
    %c0_i32_0 = arith.constant 0 : i32
    %c0_i32_1 = arith.constant 0 : i32
    return %3, %c0_i32, %c0_i32_0 : i32, i32, i32
  }
  func.func @transform_1(%arg0: i32, %arg1: i32) -> (i32, i32, i32) {
    %c2_i32 = arith.constant 2 : i32
    %0 = arith.muli %c2_i32, %arg1 : i32
    %c1_i32 = arith.constant 1 : i32
    %1 = arith.subi %c1_i32, %0 : i32
    %2 = arith.muli %arg0, %1 : i32
    %3 = arith.addi %arg1, %2 : i32
    %c0_i32 = arith.constant 0 : i32
    %c0_i32_0 = arith.constant 0 : i32
    %c0_i32_1 = arith.constant 0 : i32
    return %3, %c0_i32, %c0_i32_0 : i32, i32, i32
  }
  func.func @transform_2(%arg0: i32, %arg1: i32) -> (i32, i32, i32, i32) {
    %c0_i32 = arith.constant 0 : i32
    %c0_i32_0 = arith.constant 0 : i32
    %c0_i32_1 = arith.constant 0 : i32
    %c0_i32_2 = arith.constant 0 : i32
    return %arg0, %c0_i32, %c0_i32_0, %c0_i32_1 : i32, i32, i32, i32
  }
  func.func @transform_3(%arg0: i32, %arg1: i32) -> (i32, i32, i32) {
    %c0_i32 = arith.constant 0 : i32
    %c0_i32_0 = arith.constant 0 : i32
    %c0_i32_1 = arith.constant 0 : i32
    return %arg0, %c0_i32, %c0_i32_0 : i32, i32, i32
  }
  func.func @transform_4(%arg0: i32, %arg1: i32) -> (i32, i32, i32, i32) {
    %c0_i32 = arith.constant 0 : i32
    %c0_i32_0 = arith.constant 0 : i32
    %c0_i32_1 = arith.constant 0 : i32
    %c0_i32_2 = arith.constant 0 : i32
    return %arg0, %c0_i32, %c0_i32_0, %c0_i32_1 : i32, i32, i32, i32
  }
  func.func @transform_5(%arg0: i32, %arg1: i32) -> (i32, i32, i32) {
    %c0_i32 = arith.constant 0 : i32
    %c0_i32_0 = arith.constant 0 : i32
    %c0_i32_1 = arith.constant 0 : i32
    return %arg0, %c0_i32, %c0_i32_0 : i32, i32, i32
  }
  func.func @transform_6(%arg0: i32, %arg1: i32) -> (i32, i32, i32, i32) {
    %c2_i32 = arith.constant 2 : i32
    %0 = arith.muli %c2_i32, %arg1 : i32
    %c1_i32 = arith.constant 1 : i32
    %1 = arith.subi %c1_i32, %0 : i32
    %2 = arith.muli %arg0, %1 : i32
    %3 = arith.addi %arg1, %2 : i32
    %c0_i32 = arith.constant 0 : i32
    %c0_i32_0 = arith.constant 0 : i32
    %c0_i32_1 = arith.constant 0 : i32
    return %arg0, %3, %c0_i32, %c0_i32_0 : i32, i32, i32, i32
  }
  func.func @transform_7(%arg0: i32, %arg1: i32) -> (i32, i32, i32) {
    %c0_i32 = arith.constant 0 : i32
    %c0_i32_0 = arith.constant 0 : i32
    %c0_i32_1 = arith.constant 0 : i32
    return %arg0, %c0_i32, %c0_i32_0 : i32, i32, i32
  }
}

</mosaic_0001>

<llo_original>
// kernel: tpu_custom_call.1
$region0: #{tpu_custom_call.1}
  #allocation0 [shape = 'u32[]', space=smem, size = 0x4, offset = 0x4, fixed_abs, tag = 'smem constant byte address 0x4 - core index']
  #allocation1 [shape = 'u32[144,128]{1,0:T(1,128)}', space=vmem, size = 0x12000, scoped, tag = 'internal scratch']
  #allocation2 [shape = 'bf16[3,4,8,16]{3,2,1,0:T(8,128)(2,1)}', space=vmem, size = 0x6000, scoped, tag = 'scratch operand']
  #allocation3 [shape = 'f32[8,16]{1,0:T(8,128)}', space=vmem, size = 0x1000, scoped, tag = 'scratch operand']
  %s0 = inlined_call_operand.vmem [shape: bf16[2,32,32], index: 0, kind: input, shape index: {}]
  %s1 = inlined_call_operand.vmem [shape: f32[8,8,1], index: 1, kind: input, shape index: {}]
  %s2 = inlined_call_operand.vmem [shape: bf16[2,3,32,16], index: 2, kind: input, shape index: {}]
  %s3 = inlined_call_operand.vmem [shape: bf16[2,16,48], index: 3, kind: input, shape index: {}]
  %s4 = inlined_call_operand.vmem [shape: f32[2,3,1,16], index: 4, kind: input, shape index: {}]
  %s5 = inlined_call_operand.vmem [shape: f32[2,1,16], index: 5, kind: input, shape index: {}]
  %s6 = inlined_call_operand.hbm [shape: bf16[2,8,8,16], index: 6, kind: output, shape index: {0}]
  %s7 = inlined_call_operand.hbm [shape: f32[2,8,16], index: 7, kind: output, shape index: {1}]
  %8 = xla_tuple %s6, %s7
  %s9 = sld [smem:[#allocation0]]
  $region69: #{tpu_custom_call.1} parent=0
    _
  %s11 = ssub.s32 1, %s9
  %s12 = scalar_select 0, %s11, %s9
  $region1: #{tpu_custom_call.1} parent=0
    #allocation4 [shape = 'u8[16384]{0}', space=vmem, size = 0x4000, scoped, tag = 'output window, operand 0']
    #allocation5 [shape = 's32[2]{0}', space=sflag, size = 0x8, scoped, tag = 'scoped memory for tpu_custom_call.1']
    #allocation6 [shape = 'u8[8192]{0}', space=vmem, size = 0x2000, scoped, tag = 'output window, operand 1']
    #allocation7 [shape = 's32[2]{0}', space=sflag, size = 0x8, scoped, tag = 'scoped memory for tpu_custom_call.1']
    %13 = vsyncpa [#allocation5], 0
    %s14 = scalar_lea.sflag [#allocation5], 1
    %15 = vsyncpa %s14, 0
    %16 = vsyncpa [#allocation7], 0
    %s17 = scalar_lea.sflag [#allocation7], 1
    %18 = vsyncpa %s17, 0
    loop: start=0, step=1, limit=6
    $region2: #{tpu_custom_call.1} parent=1 // loop_pre_header
      _
    $region3: #{tpu_custom_call.1} parent=1 // loop_header
      %s20 = sphi 0, %s24
      %p21 = scmp.ge.s32.totalorder %s20, 6
      %s27 = sphi 0, %s39
      %s28 = sphi 0, %s35
      %s29 = sphi 0, %s27
      %s30 = sphi 0, %s28
      %s31 = sphi 0, %s29
      %s32 = sphi 0, %s30
      %s50 = sphi 0, %s52
      %s53 = sphi 0, %s50
      %s54 = sphi 0, %s53
      %s70 = sphi 0, %s54
      %s84 = sphi 0, %s86
      %s87 = sphi 0, %s84
      %s88 = sphi 0, %s87
      %s104 = sphi 0, %s88
      %s110 = sphi 0, %s112
      %s113 = sphi 0, %s110
      %s114 = sphi 0, %s113
      %s130 = sphi 0, %s114
      %s136 = sphi 0, %s138
      %s139 = sphi 0, %s136
      %s140 = sphi 0, %s139
      %s156 = sphi 0, %s140
      %s162 = sphi 0, %s164
      %s165 = sphi 0, %s162
      %s166 = sphi 0, %s165
      %s182 = sphi 0, %s166
      %s188 = sphi 0, %s190
      %s191 = sphi 0, %s188
      %s192 = sphi 0, %s191
      %s208 = sphi 0, %s192
      %s224 = sphi 0, %s226
      %s227 = sphi 0, %s224
      %s228 = sphi 0, %s227
      %s244 = sphi 0, %s228
      %s250 = sphi 0, %s252
      %s253 = sphi 0, %s250
      %s254 = sphi 0, %s253
      %s270 = sphi 0, %s254
    $region4: #{tpu_custom_call.1} parent=1 // loop_header_branch
      %23 = sbr.rel (%p21) target = $region8
    $region5: #{tpu_custom_call.1} parent=1 // loop_body
      %s25 = ssub.s32 %s20, 1
      %s26 = ssub.s32 %s20, 2
      %s33 = sadd.s32 1, %s28
      %p34 = scmp.ge.s32.totalorder %s33, 2
      %s35 = scalar_select %p34, 0, %s33
      %s36 = sadd.s32 1, %s27
      %s37 = scalar_select %p34, %s36, %s27
      %p38 = scmp.ge.s32.totalorder %s37, 2
      %s39 = scalar_select %p38, 0, %s37
      %s40 = smul.u32 %s28, 2
      %s41 = ssub.s32 1, %s40
      %s42 = smul.u32 %s27, %s41
      %s43 = sadd.s32 %s28, %s42
      %s44 = smul.u32 %s35, 2
      %s45 = ssub.s32 1, %s44
      %s46 = smul.u32 %s39, %s45
      %s47 = sadd.s32 %s35, %s46
      %s48 = ssub.s32 %s43, %s47
      %p49 = scmp.eq.s32.totalorder %s48, 0
      %s51 = sadd.s32 %s50, 1
      %s52 = scalar_select %p49, %s50, %s51
      %p55 = pneg %p49
      %p56 = scmp.eq.s32.totalorder %s20, 3
      %p57 = por %p55, %p56
      %p58 = scmp.ne.s32.totalorder %s50, %s53
      %p59 = scmp.eq.s32.totalorder %s20, 0
      %p60 = por %p58, %p59
      %p61 = scmp.ne.s32.totalorder %s50, %s53
      %p62 = scmp.eq.s32.totalorder %s25, 3
      %p63 = por %p61, %p62
      %p64 = scmp.ne.s32.totalorder %s53, %s54
      %p65 = scmp.eq.s32.totalorder %s25, 0
      %p66 = por %p64, %p65
      %p67 = scmp.ne.s32.totalorder %s53, %s54
      %p68 = scmp.eq.s32.totalorder %s26, 3
      %p69 = por %p67, %p68
      %p71 = scmp.ne.s32.totalorder %s54, %s70
      %p72 = scmp.eq.s32.totalorder %s26, 0
      %p73 = por %p71, %p72
      %s74 = smul.u32 %s28, 2
      %s75 = ssub.s32 1, %s74
      %s76 = smul.u32 %s27, %s75
      %s77 = sadd.s32 %s28, %s76
      %s78 = smul.u32 %s35, 2
      %s79 = ssub.s32 1, %s78
      %s80 = smul.u32 %s39, %s79
      %s81 = sadd.s32 %s35, %s80
      %s82 = ssub.s32 %s77, %s81
      %p83 = scmp.eq.s32.totalorder %s82, 0
      %s85 = sadd.s32 %s84, 1
      %s86 = scalar_select %p83, %s84, %s85
      %p89 = pneg %p83
      %p90 = scmp.eq.s32.totalorder %s20, 3
      %p91 = por %p89, %p90
      %p92 = scmp.ne.s32.totalorder %s84, %s87
      %p93 = scmp.eq.s32.totalorder %s20, 0
      %p94 = por %p92, %p93
      %p95 = scmp.ne.s32.totalorder %s84, %s87
      %p96 = scmp.eq.s32.totalorder %s25, 3
      %p97 = por %p95, %p96
      %p98 = scmp.ne.s32.totalorder %s87, %s88
      %p99 = scmp.eq.s32.totalorder %s25, 0
      %p100 = por %p98, %p99
      %p101 = scmp.ne.s32.totalorder %s87, %s88
      %p102 = scmp.eq.s32.totalorder %s26, 3
      %p103 = por %p101, %p102
      %p105 = scmp.ne.s32.totalorder %s88, %s104
      %p106 = scmp.eq.s32.totalorder %s26, 0
      %p107 = por %p105, %p106
      %s108 = ssub.s32 %s27, %s39
      %p109 = scmp.eq.s32.totalorder %s108, 0
      %s111 = sadd.s32 %s110, 1
      %s112 = scalar_select %p109, %s110, %s111
      %p115 = pneg %p109
      %p116 = scmp.eq.s32.totalorder %s20, 3
      %p117 = por %p115, %p116
      %p118 = scmp.ne.s32.totalorder %s110, %s113
      %p119 = scmp.eq.s32.totalorder %s20, 0
      %p120 = por %p118, %p119
      %p121 = scmp.ne.s32.totalorder %s110, %s113
      %p122 = scmp.eq.s32.totalorder %s25, 3
      %p123 = por %p121, %p122
      %p124 = scmp.ne.s32.totalorder %s113, %s114
      %p125 = scmp.eq.s32.totalorder %s25, 0
      %p126 = por %p124, %p125
      %p127 = scmp.ne.s32.totalorder %s113, %s114
      %p128 = scmp.eq.s32.totalorder %s26, 3
      %p129 = por %p127, %p128
      %p131 = scmp.ne.s32.totalorder %s114, %s130
      %p132 = scmp.eq.s32.totalorder %s26, 0
      %p133 = por %p131, %p132
      %s134 = ssub.s32 %s27, %s39
      %p135 = scmp.eq.s32.totalorder %s134, 0
      %s137 = sadd.s32 %s136, 1
      %s138 = scalar_select %p135, %s136, %s137
      %p141 = pneg %p135
      %p142 = scmp.eq.s32.totalorder %s20, 3
      %p143 = por %p141, %p142
      %p144 = scmp.ne.s32.totalorder %s136, %s139
      %p145 = scmp.eq.s32.totalorder %s20, 0
      %p146 = por %p144, %p145
      %p147 = scmp.ne.s32.totalorder %s136, %s139
      %p148 = scmp.eq.s32.totalorder %s25, 3
      %p149 = por %p147, %p148
      %p150 = scmp.ne.s32.totalorder %s139, %s140
      %p151 = scmp.eq.s32.totalorder %s25, 0
      %p152 = por %p150, %p151
      %p153 = scmp.ne.s32.totalorder %s139, %s140
      %p154 = scmp.eq.s32.totalorder %s26, 3
      %p155 = por %p153, %p154
      %p157 = scmp.ne.s32.totalorder %s140, %s156
      %p158 = scmp.eq.s32.totalorder %s26, 0
      %p159 = por %p157, %p158
      %s160 = ssub.s32 %s27, %s39
      %p161 = scmp.eq.s32.totalorder %s160, 0
      %s163 = sadd.s32 %s162, 1
      %s164 = scalar_select %p161, %s162, %s163
      %p167 = pneg %p161
      %p168 = scmp.eq.s32.totalorder %s20, 3
      %p169 = por %p167, %p168
      %p170 = scmp.ne.s32.totalorder %s162, %s165
      %p171 = scmp.eq.s32.totalorder %s20, 0
      %p172 = por %p170, %p171
      %p173 = scmp.ne.s32.totalorder %s162, %s165
      %p174 = scmp.eq.s32.totalorder %s25, 3
      %p175 = por %p173, %p174
      %p176 = scmp.ne.s32.totalorder %s165, %s166
      %p177 = scmp.eq.s32.totalorder %s25, 0
      %p178 = por %p176, %p177
      %p179 = scmp.ne.s32.totalorder %s165, %s166
      %p180 = scmp.eq.s32.totalorder %s26, 3
      %p181 = por %p179, %p180
      %p183 = scmp.ne.s32.totalorder %s166, %s182
      %p184 = scmp.eq.s32.totalorder %s26, 0
      %p185 = por %p183, %p184
      %s186 = ssub.s32 %s27, %s39
      %p187 = scmp.eq.s32.totalorder %s186, 0
      %s189 = sadd.s32 %s188, 1
      %s190 = scalar_select %p187, %s188, %s189
      %p193 = pneg %p187
      %p194 = scmp.eq.s32.totalorder %s20, 3
      %p195 = por %p193, %p194
      %p196 = scmp.ne.s32.totalorder %s188, %s191
      %p197 = scmp.eq.s32.totalorder %s20, 0
      %p198 = por %p196, %p197
      %p199 = scmp.ne.s32.totalorder %s188, %s191
      %p200 = scmp.eq.s32.totalorder %s25, 3
      %p201 = por %p199, %p200
      %p202 = scmp.ne.s32.totalorder %s191, %s192
      %p203 = scmp.eq.s32.totalorder %s25, 0
      %p204 = por %p202, %p203
      %p205 = scmp.ne.s32.totalorder %s191, %s192
      %p206 = scmp.eq.s32.totalorder %s26, 3
      %p207 = por %p205, %p206
      %p209 = scmp.ne.s32.totalorder %s192, %s208
      %p210 = scmp.eq.s32.totalorder %s26, 0
      %p211 = por %p209, %p210
      %s212 = smul.u32 %s28, 2
      %s213 = ssub.s32 1, %s212
      %s214 = smul.u32 %s27, %s213
      %s215 = sadd.s32 %s28, %s214
      %s216 = smul.u32 %s35, 2
      %s217 = ssub.s32 1, %s216
      %s218 = smul.u32 %s39, %s217
      %s219 = sadd.s32 %s35, %s218
      %s220 = ssub.s32 %s27, %s39
      %s221 = ssub.s32 %s215, %s219
      %s222 = sor.u32 %s220, %s221
      %p223 = scmp.eq.s32.totalorder %s222, 0
      %s225 = sadd.s32 %s224, 1
      %s226 = scalar_select %p223, %s224, %s225
      %p229 = pneg %p223
      %p230 = scmp.eq.s32.totalorder %s20, 3
      %p231 = por %p229, %p230
      %p232 = scmp.ne.s32.totalorder %s224, %s227
      %p233 = scmp.eq.s32.totalorder %s20, 0
      %p234 = por %p232, %p233
      %p235 = scmp.ne.s32.totalorder %s224, %s227
      %p236 = scmp.eq.s32.totalorder %s25, 3
      %p237 = por %p235, %p236
      %p238 = scmp.ne.s32.totalorder %s227, %s228
      %p239 = scmp.eq.s32.totalorder %s25, 0
      %p240 = por %p238, %p239
      %p241 = scmp.ne.s32.totalorder %s227, %s228
      %p242 = scmp.eq.s32.totalorder %s26, 3
      %p243 = por %p241, %p242
      %p245 = scmp.ne.s32.totalorder %s228, %s244
      %p246 = scmp.eq.s32.totalorder %s26, 0
      %p247 = por %p245, %p246
      %s248 = ssub.s32 %s27, %s39
      %p249 = scmp.eq.s32.totalorder %s248, 0
      %s251 = sadd.s32 %s250, 1
      %s252 = scalar_select %p249, %s250, %s251
      %p255 = pneg %p249
      %p256 = scmp.eq.s32.totalorder %s20, 3
      %p257 = por %p255, %p256
      %p258 = scmp.ne.s32.totalorder %s250, %s253
      %p259 = scmp.eq.s32.totalorder %s20, 0
      %p260 = por %p258, %p259
      %p261 = scmp.ne.s32.totalorder %s250, %s253
      %p262 = scmp.eq.s32.totalorder %s25, 3
      %p263 = por %p261, %p262
      %p264 = scmp.ne.s32.totalorder %s253, %s254
      %p265 = scmp.eq.s32.totalorder %s25, 0
      %p266 = por %p264, %p265
      %p267 = scmp.ne.s32.totalorder %s253, %s254
      %p268 = scmp.eq.s32.totalorder %s26, 3
      %p269 = por %p267, %p268
      %p271 = scmp.ne.s32.totalorder %s254, %s270
      %p272 = scmp.eq.s32.totalorder %s26, 0
      %p273 = por %p271, %p272
      %p274 = scmp.le.s32.totalorder 1, %s20
      %p275 = scmp.lt.s32.totalorder %s20, 5
      %p276 = pnand %p274, %p275
      %p277 = pneg %p276
      // Predicated region
      $region9: #{tpu_custom_call.1} parent=5 // pred_check
        _
      $region10: #{tpu_custom_call.1} parent=5 // pred_check_branch
        %279 = sbr.rel (%p276) target = $region12
      $region11: #{tpu_custom_call.1} parent=5 // pred_region
        %s280 = ssub.s32 %s20, 1
      $region12: #{tpu_custom_call.1} parent=5 // pred_fallthru
        _
      %p281 = scmp.lt.s32.totalorder %s20, 4
      // Predicated region
      $region13: #{tpu_custom_call.1} parent=5 // pred_check
        %p282 = pneg %p281
      $region14: #{tpu_custom_call.1} parent=5 // pred_check_branch
        %284 = sbr.rel (%p282) target = $region16
      $region15: #{tpu_custom_call.1} parent=5 // pred_region
        // Predicated region
        $region17: #{tpu_custom_call.1} parent=15 // pred_check
          %p285 = pneg %p60
        $region18: #{tpu_custom_call.1} parent=15 // pred_check_branch
          %287 = sbr.rel (%p285) target = $region20
        $region19: #{tpu_custom_call.1} parent=15 // pred_region
          %s288 = smul.u32 %s28, 2
          %s289 = ssub.s32 1, %s288
          %s290 = smul.u32 %s27, %s289
          %s291 = sadd.s32 %s28, %s290
          %p292 = scmp.lt.s32.totalorder %s291, 1
          %s293 = scalar_select %p292, %s291, 1
          %s294 = smul.addr %s293, 4
          %s295 = smul.addr %s294, 4
          %s296 = scalar_lea.vmem %s0, %s295
          %s297 = smul.u32 %s28, 2
          %s298 = ssub.s32 1, %s297
          %s299 = smul.u32 %s27, %s298
          %s300 = sadd.s32 %s28, %s299
        $region20: #{tpu_custom_call.1} parent=15 // pred_fallthru
          _
        // Predicated region
        $region21: #{tpu_custom_call.1} parent=15 // pred_check
          %p301 = pneg %p94
        $region22: #{tpu_custom_call.1} parent=15 // pred_check_branch
          %303 = sbr.rel (%p301) target = $region24
        $region23: #{tpu_custom_call.1} parent=15 // pred_region
          %s304 = smul.u32 %s28, 2
          %s305 = ssub.s32 1, %s304
          %s306 = smul.u32 %s27, %s305
          %s307 = sadd.s32 %s28, %s306
          %s308 = smul.u32 4, %s307
          %p309 = scmp.lt.s32.totalorder %s308, 7
          %s310 = scalar_select %p309, %s308, 7
          %s311 = smul.addr %s310, 8
          %s312 = scalar_lea.vmem %s1, %s311
          %s313 = smul.u32 %s28, 2
          %s314 = ssub.s32 1, %s313
          %s315 = smul.u32 %s27, %s314
          %s316 = sadd.s32 %s28, %s315
          %s317 = smul.u32 4, %s316
        $region24: #{tpu_custom_call.1} parent=15 // pred_fallthru
          _
        // Predicated region
        $region25: #{tpu_custom_call.1} parent=15 // pred_check
          %p318 = pneg %p120
        $region26: #{tpu_custom_call.1} parent=15 // pred_check_branch
          %320 = sbr.rel (%p318) target = $region28
        $region27: #{tpu_custom_call.1} parent=15 // pred_region
          %p321 = scmp.lt.s32.totalorder %s27, 1
          %s322 = scalar_select %p321, %s27, 1
          %s323 = smul.addr %s322, 12
          %s324 = smul.addr %s323, 4
          %s325 = scalar_lea.vmem %s2, %s324
        $region28: #{tpu_custom_call.1} parent=15 // pred_fallthru
          _
        // Predicated region
        $region29: #{tpu_custom_call.1} parent=15 // pred_check
          %p326 = pneg %p146
        $region30: #{tpu_custom_call.1} parent=15 // pred_check_branch
          %328 = sbr.rel (%p326) target = $region32
        $region31: #{tpu_custom_call.1} parent=15 // pred_region
          %p329 = scmp.lt.s32.totalorder %s27, 1
          %s330 = scalar_select %p329, %s27, 1
          %s331 = smul.addr %s330, 2
          %s332 = smul.addr %s331, 4
          %s333 = scalar_lea.vmem %s3, %s332
        $region32: #{tpu_custom_call.1} parent=15 // pred_fallthru
          _
        // Predicated region
        $region33: #{tpu_custom_call.1} parent=15 // pred_check
          %p334 = pneg %p172
        $region34: #{tpu_custom_call.1} parent=15 // pred_check_branch
          %336 = sbr.rel (%p334) target = $region36
        $region35: #{tpu_custom_call.1} parent=15 // pred_region
          %p337 = scmp.lt.s32.totalorder %s27, 1
          %s338 = scalar_select %p337, %s27, 1
          %s339 = smul.addr %s338, 3
          %s340 = scalar_lea.vmem %s4, %s339
        $region36: #{tpu_custom_call.1} parent=15 // pred_fallthru
          _
        // Predicated region
        $region37: #{tpu_custom_call.1} parent=15 // pred_check
          %p341 = pneg %p198
        $region38: #{tpu_custom_call.1} parent=15 // pred_check_branch
          %343 = sbr.rel (%p341) target = $region40
        $region39: #{tpu_custom_call.1} parent=15 // pred_region
          %p344 = scmp.lt.s32.totalorder %s27, 1
          %s345 = scalar_select %p344, %s27, 1
          %s346 = scalar_lea.vmem %s5, %s345
        $region40: #{tpu_custom_call.1} parent=15 // pred_fallthru
          _
      $region16: #{tpu_custom_call.1} parent=5 // pred_fallthru
        _
      %p347 = scmp.le.s32.totalorder 1, %s20
      %p348 = scmp.lt.s32.totalorder %s20, 5
      %p349 = pnand %p347, %p348
      %p350 = pneg %p349
      // Predicated region
      $region41: #{tpu_custom_call.1} parent=5 // pred_check
        _
      $region42: #{tpu_custom_call.1} parent=5 // pred_check_branch
        %352 = sbr.rel (%p349) target = $region44
      $region43: #{tpu_custom_call.1} parent=5 // pred_region
        %s353 = ssub.s32 %s20, 1
        %s354 = smul.u32 %s30, 2
        %s355 = ssub.s32 1, %s354
        %s356 = smul.u32 %s29, %s355
        %s357 = sadd.s32 %s30, %s356
        %p358 = scmp.lt.s32.totalorder %s357, 1
        %s359 = scalar_select %p358, %s357, 1
        %s360 = smul.addr %s359, 4
        %s361 = smul.addr %s360, 4
        %s362 = scalar_lea.vmem %s0, %s361
        %p363 = pneg %p66
        %p364 = pneg %p63
        %s365 = smul.u32 %s30, 2
        %s366 = ssub.s32 1, %s365
        %s367 = smul.u32 %s29, %s366
        %s368 = sadd.s32 %s30, %s367
        %s369 = smul.u32 4, %s368
        %p370 = scmp.lt.s32.totalorder %s369, 7
        %s371 = scalar_select %p370, %s369, 7
        %s372 = smul.addr %s371, 8
        %s373 = scalar_lea.vmem %s1, %s372
        %p374 = pneg %p100
        %p375 = pneg %p97
        %p376 = scmp.lt.s32.totalorder %s29, 1
        %s377 = scalar_select %p376, %s29, 1
        %s378 = smul.addr %s377, 12
        %s379 = smul.addr %s378, 4
        %s380 = scalar_lea.vmem %s2, %s379
        %p381 = pneg %p126
        %p382 = pneg %p123
        %p383 = scmp.lt.s32.totalorder %s29, 1
        %s384 = scalar_select %p383, %s29, 1
        %s385 = smul.addr %s384, 2
        %s386 = smul.addr %s385, 4
        %s387 = scalar_lea.vmem %s3, %s386
        %p388 = pneg %p152
        %p389 = pneg %p149
        %p390 = scmp.lt.s32.totalorder %s29, 1
        %s391 = scalar_select %p390, %s29, 1
        %s392 = smul.addr %s391, 3
        %s393 = scalar_lea.vmem %s4, %s392
        %p394 = pneg %p178
        %p395 = pneg %p175
        %p396 = scmp.lt.s32.totalorder %s29, 1
        %s397 = scalar_select %p396, %s29, 1
        %s398 = scalar_lea.vmem %s5, %s397
        %p399 = pneg %p204
        %p400 = pneg %p201
        %p401 = pneg %p240
        %p402 = pneg %p237
        %s403 = sand.u32 %s227, 1
        %s404 = scalar_lea.sflag [#allocation5], %s403
        %s405 = sand.u32 %s227, 1
        %s406 = smul.addr %s405, 16
        %s407 = scalar_lea.vmem [#allocation4], %s406
        %p408 = pneg %p266
        %p409 = pneg %p263
        %s410 = sand.u32 %s253, 1
        %s411 = scalar_lea.sflag [#allocation7], %s410
        %s412 = sand.u32 %s253, 1
        %s413 = smul.addr %s412, 8
        %s414 = scalar_lea.vmem [#allocation6], %s413
        %s415 = smul.u32 %s30, 2
        %s416 = ssub.s32 1, %s415
        %s417 = smul.u32 %s29, %s416
        %s418 = sadd.s32 %s30, %s417
        %p419 = scmp.lt.s32.totalorder %s418, 1
        %s420 = scalar_select %p419, %s418, 1
        %s421 = smul.addr %s420, 4
        %s422 = smul.addr %s421, 4
        %s423 = scalar_lea.vmem %s0, %s422
        %s424 = smul.u32 %s30, 2
        %s425 = ssub.s32 1, %s424
        %s426 = smul.u32 %s29, %s425
        %s427 = sadd.s32 %s30, %s426
        %s428 = smul.u32 %s30, 2
        %s429 = ssub.s32 1, %s428
        %s430 = smul.u32 %s29, %s429
        %s431 = sadd.s32 %s30, %s430
        %s432 = smul.u32 4, %s431
        %p433 = scmp.lt.s32.totalorder %s432, 7
        %s434 = scalar_select %p433, %s432, 7
        %s435 = smul.addr %s434, 8
        %s436 = scalar_lea.vmem %s1, %s435
        %s437 = smul.u32 %s30, 2
        %s438 = ssub.s32 1, %s437
        %s439 = smul.u32 %s29, %s438
        %s440 = sadd.s32 %s30, %s439
        %s441 = smul.u32 4, %s440
        %p442 = scmp.lt.s32.totalorder %s29, 1
        %s443 = scalar_select %p442, %s29, 1
        %s444 = smul.addr %s443, 12
        %s445 = smul.addr %s444, 4
        %s446 = scalar_lea.vmem %s2, %s445
        %p447 = scmp.lt.s32.totalorder %s29, 1
        %s448 = scalar_select %p447, %s29, 1
        %s449 = smul.addr %s448, 2
        %s450 = smul.addr %s449, 4
        %s451 = scalar_lea.vmem %s3, %s450
        %p452 = scmp.lt.s32.totalorder %s29, 1
        %s453 = scalar_select %p452, %s29, 1
        %s454 = smul.addr %s453, 3
        %s455 = scalar_lea.vmem %s4, %s454
        %p456 = scmp.lt.s32.totalorder %s29, 1
        %s457 = scalar_select %p456, %s29, 1
        %s458 = scalar_lea.vmem %s5, %s457
        %s459 = smul.u32 %s30, 2
        %s460 = ssub.s32 1, %s459
        %s461 = smul.u32 %s29, %s460
        %s462 = sadd.s32 %s30, %s461
        %s463 = smul.u32 4, %s462
        %p465 = scmp.eq.s32.totalorder %s30, 0
        // Predicated region
        $region45: #{tpu_custom_call.1} parent=43 // pred_check
          %p466 = pneg %p465
        $region46: #{tpu_custom_call.1} parent=43 // pred_check_branch
          %468 = sbr.rel (%p466) target = $region48
        $region47: #{tpu_custom_call.1} parent=43 // pred_region
          %vm469 = vcmask 130048
          %470 = vst.msk [vmem:[#allocation3] sm:$0xff] %vm469, 0.0
        $region48: #{tpu_custom_call.1} parent=43 // pred_fallthru
          _
        %v471 = vld [vmem:[%s423] sm:$0xf]
        %v472 = vld [vmem:[%s423 + $0x4] sm:$0xf]
        %v473 = vld [vmem:[%s423 + $0x8] sm:$0xf]
        %v474 = vld [vmem:[%s423 + $0xc] sm:$0xf]
        %v475 = vld [vmem:[%s446] sm:$0xf]
        %v476 = vld [vmem:[%s446 + $0x4] sm:$0xf]
        %v477 = vld [vmem:[%s446 + $0x8] sm:$0xf]
        %v478 = vld [vmem:[%s446 + $0xc] sm:$0xf]
        %v479 = vld [vmem:[%s455] sm:$0x1]
        %v481 = vlaneseq
        %v482 = vshrl.u32 %v481, 7
        %v483 = vsub.s32 0, %v482
        %v484 = vrot.slane %v479, %v483
        %v490 = vunpack.c.l.b16 %v471
        %v491 = vunpack.c.l.b16 %v472
        %v492 = vunpack.c.l.b16 %v473
        %v493 = vunpack.c.l.b16 %v474
        %v494 = vpack.c.b16 %v491, %v490
        %v495 = vpack.c.b16 %v493, %v492
        %v500 = vunpack.c.l.b16 %v475
        %v501 = vunpack.c.l.b16 %v476
        %v502 = vunpack.c.l.b16 %v477
        %v503 = vunpack.c.l.b16 %v478
        %v504 = vpack.c.b16 %v501, %v500
        %v505 = vpack.c.b16 %v503, %v502
        %vm508 = vcmask 261120
        %v510 = vsel %vm508, %v494, 0
        %v513 = vsel %vm508, %v495, 0
        %515 = vmatprep.subr.bf16.mxu0 0
        %516 = vmatpush1.bf16.msra.mxu0 0
        %517 = vmatprep.subr.bf16.mxu0 0
        %518 = vmatpush1.bf16.msra.mxu0 0
        %519 = vmatprep.subr.bf16.mxu0 0
        %520 = vmatpush1.bf16.msra.mxu0 0
        %521 = vmatprep.subr.bf16.mxu0 0
        %522 = vmatpush1.bf16.msra.mxu0 0
        %523 = vmatprep.subr.bf16.mxu0 0
        %524 = vmatpush1.bf16.msra.mxu0 0
        %525 = vmatprep.subr.bf16.mxu0 0
        %526 = vmatpush1.bf16.msra.mxu0 0
        %527 = vmatprep.subr.bf16.mxu0 0
        %528 = vmatpush1.bf16.msra.mxu0 %v505
        %529 = vmatprep.subr.bf16.mxu0 0
        %530 = vmatpush1.bf16.msra.mxu0 %v504
        %531 = vmatprep.subr.bf16.mxu0 0
        %532 = vmatpush2.bf16.msra.mxu0 0
        %533 = vmatprep.subr.bf16.mxu0 0
        %534 = vmatpush2.bf16.msra.mxu0 0
        %535 = vmatprep.subr.bf16.mxu0 0
        %536 = vmatpush2.bf16.msra.mxu0 0
        %537 = vmatprep.subr.bf16.mxu0 0
        %538 = vmatpush2.bf16.msra.mxu0 0
        %539 = vmatprep.subr.bf16.mxu0 0
        %540 = vmatpush2.bf16.msra.mxu0 0
        %541 = vmatprep.subr.bf16.mxu0 0
        %542 = vmatpush2.bf16.msra.mxu0 0
        %543 = vmatprep.subr.bf16.mxu0 0
        %544 = vmatpush2.bf16.msra.mxu0 0
        %545 = vmatprep.subr.bf16.mxu0 0
        %546 = vmatpush2.bf16.msra.mxu0 0
        %547 = vmatprep.mubr.bf16.mxu0 0
        %548 = vmatmul.mubr.bf16.gmra.mxu0 %v510
        %v549 = vpop.f32.mrf.mxu0
        %v550 = vadd.f32 %v484, %v549
        %v551 = vpop.f32.mrf.mxu0
        %v552 = vpop.f32.mrf.mxu0
        %v553 = vadd.f32 %v484, %v552
        %v554 = vpop.f32.mrf.mxu0
        %555 = vmatprep.mubr.bf16.mxu0 0
        %556 = vmatmul.mubr.bf16.gmra.mxu0 %v513
        %v557 = vpop.f32.mrf.mxu0
        %v558 = vadd.f32 %v484, %v557
        %v559 = vpop.f32.mrf.mxu0
        %v560 = vpop.f32.mrf.mxu0
        %v561 = vadd.f32 %v484, %v560
        %v562 = vpop.f32.mrf.mxu0
        %563 = vdwg.mxu0
        %v564 = vpack.c.bf16 %v550, %v550
        %vm565 = vcmask 125952
        %566 = vst.msk [vmem:[#allocation2] sm:$0xf] %vm565, %v564
        %v567 = vpack.c.bf16 %v553, %v553
        %s568 = scalar_lea.vmem [#allocation2], 4
        %569 = vst.msk [vmem:[%s568] sm:$0xf] %vm565, %v567
        %v570 = vpack.c.bf16 %v558, %v558
        %s571 = scalar_lea.vmem [#allocation2], 8
        %572 = vst.msk [vmem:[%s571] sm:$0xf] %vm565, %v570
        %v573 = vpack.c.bf16 %v561, %v561
        %s574 = scalar_lea.vmem [#allocation2], 12
        %575 = vst.msk [vmem:[%s574] sm:$0xf] %vm565, %v573
        %s576 = scalar_lea.vmem %s446, 16
        %v577 = vld [vmem:[%s576] sm:$0xf]
        %v578 = vld [vmem:[%s576 + $0x4] sm:$0xf]
        %v579 = vld [vmem:[%s576 + $0x8] sm:$0xf]
        %v580 = vld [vmem:[%s576 + $0xc] sm:$0xf]
        %s581 = scalar_lea.vmem %s455, 1
        %v582 = vld [vmem:[%s581] sm:$0x1]
        %v584 = vlaneseq
        %v585 = vshrl.u32 %v584, 7
        %v586 = vsub.s32 0, %v585
        %v587 = vrot.slane %v582, %v586
        %v593 = vunpack.c.l.b16 %v577
        %v594 = vunpack.c.l.b16 %v578
        %v595 = vunpack.c.l.b16 %v579
        %v596 = vunpack.c.l.b16 %v580
        %v597 = vpack.c.b16 %v594, %v593
        %v598 = vpack.c.b16 %v596, %v595
        %601 = vmatprep.subr.bf16.mxu0 0
        %602 = vmatpush1.bf16.msra.mxu0 0
        %603 = vmatprep.subr.bf16.mxu0 0
        %604 = vmatpush1.bf16.msra.mxu0 0
        %605 = vmatprep.subr.bf16.mxu0 0
        %606 = vmatpush1.bf16.msra.mxu0 0
        %607 = vmatprep.subr.bf16.mxu0 0
        %608 = vmatpush1.bf16.msra.mxu0 0
        %609 = vmatprep.subr.bf16.mxu0 0
        %610 = vmatpush1.bf16.msra.mxu0 0
        %611 = vmatprep.subr.bf16.mxu0 0
        %612 = vmatpush1.bf16.msra.mxu0 0
        %613 = vmatprep.subr.bf16.mxu0 0
        %614 = vmatpush1.bf16.msra.mxu0 %v598
        %615 = vmatprep.subr.bf16.mxu0 0
        %616 = vmatpush1.bf16.msra.mxu0 %v597
        %617 = vmatprep.subr.bf16.mxu0 0
        %618 = vmatpush2.bf16.msra.mxu0 0
        %619 = vmatprep.subr.bf16.mxu0 0
        %620 = vmatpush2.bf16.msra.mxu0 0
        %621 = vmatprep.subr.bf16.mxu0 0
        %622 = vmatpush2.bf16.msra.mxu0 0
        %623 = vmatprep.subr.bf16.mxu0 0
        %624 = vmatpush2.bf16.msra.mxu0 0
        %625 = vmatprep.subr.bf16.mxu0 0
        %626 = vmatpush2.bf16.msra.mxu0 0
        %627 = vmatprep.subr.bf16.mxu0 0
        %628 = vmatpush2.bf16.msra.mxu0 0
        %629 = vmatprep.subr.bf16.mxu0 0
        %630 = vmatpush2.bf16.msra.mxu0 0
        %631 = vmatprep.subr.bf16.mxu0 0
        %632 = vmatpush2.bf16.msra.mxu0 0
        %633 = vmatprep.mubr.bf16.mxu0 0
        %634 = vmatmul.mubr.bf16.gmra.mxu0 %v510
        %v635 = vpop.f32.mrf.mxu0
        %v636 = vadd.f32 %v587, %v635
        %v637 = vpop.f32.mrf.mxu0
        %v638 = vpop.f32.mrf.mxu0
        %v639 = vadd.f32 %v587, %v638
        %v640 = vpop.f32.mrf.mxu0
        %641 = vmatprep.mubr.bf16.mxu0 0
        %642 = vmatmul.mubr.bf16.gmra.mxu0 %v513
        %v643 = vpop.f32.mrf.mxu0
        %v644 = vadd.f32 %v587, %v643
        %v645 = vpop.f32.mrf.mxu0
        %v646 = vpop.f32.mrf.mxu0
        %v647 = vadd.f32 %v587, %v646
        %v648 = vpop.f32.mrf.mxu0
        %649 = vdwg.mxu0
        %v650 = vpack.c.bf16 %v636, %v636
        %s651 = scalar_lea.vmem [#allocation2], 16
        %652 = vst.msk [vmem:[%s651] sm:$0xf] %vm565, %v650
        %v653 = vpack.c.bf16 %v639, %v639
        %s654 = scalar_lea.vmem [#allocation2], 20
        %655 = vst.msk [vmem:[%s654] sm:$0xf] %vm565, %v653
        %v656 = vpack.c.bf16 %v644, %v644
        %s657 = scalar_lea.vmem [#allocation2], 24
        %658 = vst.msk [vmem:[%s657] sm:$0xf] %vm565, %v656
        %v659 = vpack.c.bf16 %v647, %v647
        %s660 = scalar_lea.vmem [#allocation2], 28
        %661 = vst.msk [vmem:[%s660] sm:$0xf] %vm565, %v659
        %s662 = scalar_lea.vmem %s446, 32
        %v663 = vld [vmem:[%s662] sm:$0xf]
        %v664 = vld [vmem:[%s662 + $0x4] sm:$0xf]
        %v665 = vld [vmem:[%s662 + $0x8] sm:$0xf]
        %v666 = vld [vmem:[%s662 + $0xc] sm:$0xf]
        %s667 = scalar_lea.vmem %s455, 2
        %v668 = vld [vmem:[%s667] sm:$0x1]
        %v670 = vlaneseq
        %v671 = vshrl.u32 %v670, 7
        %v672 = vsub.s32 0, %v671
        %v673 = vrot.slane %v668, %v672
        %v679 = vunpack.c.l.b16 %v663
        %v680 = vunpack.c.l.b16 %v664
        %v681 = vunpack.c.l.b16 %v665
        %v682 = vunpack.c.l.b16 %v666
        %v683 = vpack.c.b16 %v680, %v679
        %v684 = vpack.c.b16 %v682, %v681
        %687 = vmatprep.subr.bf16.mxu0 0
        %688 = vmatpush1.bf16.msra.mxu0 0
        %689 = vmatprep.subr.bf16.mxu0 0
        %690 = vmatpush1.bf16.msra.mxu0 0
        %691 = vmatprep.subr.bf16.mxu0 0
        %692 = vmatpush1.bf16.msra.mxu0 0
        %693 = vmatprep.subr.bf16.mxu0 0
        %694 = vmatpush1.bf16.msra.mxu0 0
        %695 = vmatprep.subr.bf16.mxu0 0
        %696 = vmatpush1.bf16.msra.mxu0 0
        %697 = vmatprep.subr.bf16.mxu0 0
        %698 = vmatpush1.bf16.msra.mxu0 0
        %699 = vmatprep.subr.bf16.mxu0 0
        %700 = vmatpush1.bf16.msra.mxu0 %v684
        %701 = vmatprep.subr.bf16.mxu0 0
        %702 = vmatpush1.bf16.msra.mxu0 %v683
        %703 = vmatprep.subr.bf16.mxu0 0
        %704 = vmatpush2.bf16.msra.mxu0 0
        %705 = vmatprep.subr.bf16.mxu0 0
        %706 = vmatpush2.bf16.msra.mxu0 0
        %707 = vmatprep.subr.bf16.mxu0 0
        %708 = vmatpush2.bf16.msra.mxu0 0
        %709 = vmatprep.subr.bf16.mxu0 0
        %710 = vmatpush2.bf16.msra.mxu0 0
        %711 = vmatprep.subr.bf16.mxu0 0
        %712 = vmatpush2.bf16.msra.mxu0 0
        %713 = vmatprep.subr.bf16.mxu0 0
        %714 = vmatpush2.bf16.msra.mxu0 0
        %715 = vmatprep.subr.bf16.mxu0 0
        %716 = vmatpush2.bf16.msra.mxu0 0
        %717 = vmatprep.subr.bf16.mxu0 0
        %718 = vmatpush2.bf16.msra.mxu0 0
        %719 = vmatprep.mubr.bf16.mxu0 0
        %720 = vmatmul.mubr.bf16.gmra.mxu0 %v510
        %v721 = vpop.f32.mrf.mxu0
        %v722 = vadd.f32 %v673, %v721
        %v723 = vpop.f32.mrf.mxu0
        %v724 = vpop.f32.mrf.mxu0
        %v725 = vadd.f32 %v673, %v724
        %v726 = vpop.f32.mrf.mxu0
        %727 = vmatprep.mubr.bf16.mxu0 0
        %728 = vmatmul.mubr.bf16.gmra.mxu0 %v513
        %v729 = vpop.f32.mrf.mxu0
        %v730 = vadd.f32 %v673, %v729
        %v731 = vpop.f32.mrf.mxu0
        %v732 = vpop.f32.mrf.mxu0
        %v733 = vadd.f32 %v673, %v732
        %v734 = vpop.f32.mrf.mxu0
        %735 = vdwg.mxu0
        %v736 = vpack.c.bf16 %v722, %v722
        %s737 = scalar_lea.vmem [#allocation2], 32
        %738 = vst.msk [vmem:[%s737] sm:$0xf] %vm565, %v736
        %v739 = vpack.c.bf16 %v725, %v725
        %s740 = scalar_lea.vmem [#allocation2], 36
        %741 = vst.msk [vmem:[%s740] sm:$0xf] %vm565, %v739
        %v742 = vpack.c.bf16 %v730, %v730
        %s743 = scalar_lea.vmem [#allocation2], 40
        %744 = vst.msk [vmem:[%s743] sm:$0xf] %vm565, %v742
        %v745 = vpack.c.bf16 %v733, %v733
        %s746 = scalar_lea.vmem [#allocation2], 44
        %747 = vst.msk [vmem:[%s746] sm:$0xf] %vm565, %v745
        %v748 = vld [vmem:[%s451] sm:$0xf]
        %v749 = vld [vmem:[%s451 + $0x4] sm:$0xf]
        %v750 = vld [vmem:[%s458] sm:$0x1]
        %v752 = vlaneseq
        %v753 = vshrl.u32 %v752, 7
        %v754 = vsub.s32 0, %v753
        %v755 = vrot.slane %v750, %v754
        %v756 = vld [vmem:[#allocation3] sm:$0xff]
        %p757 = scmp.eq.s32.totalorder %s29, 0
        %s758 = scalar_select %p757, 0, 3
        %s759 = smul.addr %s758, 4
        %s760 = scalar_lea.vmem [#allocation2], %s759
        %v761 = vld [vmem:[%s760] sm:$0xf]
        %v762 = vunpack.c.l.bf16 %v761
        %s763 = sadd.s32 %s758, 4
        %s764 = smul.addr %s763, 4
        %s765 = scalar_lea.vmem [#allocation2], %s764
        %v766 = vld [vmem:[%s765] sm:$0xf]
        %v767 = vunpack.c.l.bf16 %v766
        %s768 = sadd.s32 %s758, 8
        %s769 = smul.addr %s768, 4
        %s770 = scalar_lea.vmem [#allocation2], %s769
        %v771 = vld [vmem:[%s770] sm:$0xf]
        %v772 = vunpack.c.l.bf16 %v771
        %s773 = smul.u32 %s758, 8
        %s774 = scalar_lea.vmem %s436, %s773
        %v775 = vld [vmem:[%s774] sm:$0xff]
        %v776 = vpack.c.bf16 %v756, %v756
        %v779 = vunpack.c.l.b16 %v748
        %v780 = vunpack.c.l.b16 %v749
        %v781 = vpack.c.b16 %v780, %v779
        %vm783 = vcmask 130048
        %v785 = vsel %vm783, %v776, 0
        %787 = vmatprep.subr.bf16.mxu0 0
        %788 = vmatpush1.bf16.msra.mxu0 0
        %789 = vmatprep.subr.bf16.mxu0 0
        %790 = vmatpush1.bf16.msra.mxu0 0
        %791 = vmatprep.subr.bf16.mxu0 0
        %792 = vmatpush1.bf16.msra.mxu0 0
        %793 = vmatprep.subr.bf16.mxu0 0
        %794 = vmatpush1.bf16.msra.mxu0 0
        %795 = vmatprep.subr.bf16.mxu0 0
        %796 = vmatpush1.bf16.msra.mxu0 0
        %797 = vmatprep.subr.bf16.mxu0 0
        %798 = vmatpush1.bf16.msra.mxu0 0
        %799 = vmatprep.subr.bf16.mxu0 0
        %800 = vmatpush1.bf16.msra.mxu0 0
        %801 = vmatprep.subr.bf16.mxu0 0
        %802 = vmatpush1.bf16.msra.mxu0 %v781
        %803 = vmatprep.subr.bf16.mxu0 0
        %804 = vmatpush2.bf16.msra.mxu0 0
        %805 = vmatprep.subr.bf16.mxu0 0
        %806 = vmatpush2.bf16.msra.mxu0 0
        %807 = vmatprep.subr.bf16.mxu0 0
        %808 = vmatpush2.bf16.msra.mxu0 0
        %809 = vmatprep.subr.bf16.mxu0 0
        %810 = vmatpush2.bf16.msra.mxu0 0
        %811 = vmatprep.subr.bf16.mxu0 0
        %812 = vmatpush2.bf16.msra.mxu0 0
        %813 = vmatprep.subr.bf16.mxu0 0
        %814 = vmatpush2.bf16.msra.mxu0 0
        %815 = vmatprep.subr.bf16.mxu0 0
        %816 = vmatpush2.bf16.msra.mxu0 0
        %817 = vmatprep.subr.bf16.mxu0 0
        %818 = vmatpush2.bf16.msra.mxu0 0
        %819 = vmatprep.mubr.bf16.mxu0 0
        %820 = vmatmul.mubr.bf16.gmra.mxu0 %v785
        %v821 = vpop.f32.mrf.mxu0
        %v822 = vadd.f32 0.0, %v821
        %v823 = vpop.f32.mrf.mxu0
        %v824 = vpop.f32.mrf.mxu0
        %v825 = vpop.f32.mrf.mxu0
        %826 = vdwg.mxu0
        %v827 = vadd.f32 %v762, %v822
        %v828 = vxor.u32 %v827, 2147483648
        %v829 = vmul.f32 %v828, 1.442695
        %v830 = vpow.pop %v829
        %v831 = vadd.f32 %v830, 1.0
        %v832 = vrcp.pop %v831
        %v833 = vmul.f32 1.0, %v832
        %835 = vrot.lane.b32.xlu0 %v822, 112
        %v836 = vpop.permute.xlu0 %835
        %v838 = vadd.f32 %v767, %v836
        %v839 = vxor.u32 %v838, 2147483648
        %v840 = vmul.f32 %v839, 1.442695
        %v841 = vpow.pop %v840
        %v842 = vadd.f32 %v841, 1.0
        %v843 = vrcp.pop %v842
        %v844 = vmul.f32 1.0, %v843
        %845 = vrot.lane.b32.xlu0 %v755, 32
        %v846 = vpop.permute.xlu0 %845
        %v848 = vadd.f32 %v822, %v846
        %850 = vrot.lane.b32.xlu0 %v848, 96
        %v851 = vpop.permute.xlu0 %850
        %v853 = vmul.f32 %v833, %v851
        %v854 = vadd.f32 %v772, %v853
        %v855 = vtanh.pop %v854
        %v856 = vsub.f32 1.0, %v844
        %v857 = vmul.f32 %v856, %v855
        %v858 = vmul.f32 %v844, %v756
        %v859 = vadd.f32 %v857, %v858
        %861 = vset.pattern.permute.xlu0 0
        %862 = vperm.xlu0 %861, %v775
        %v863 = vpop.permute.xlu0 %862
        %v865 = vmul.f32 %v863, %v859
        %v866 = vsub.f32 1.0, %v775
        %868 = vset.pattern.permute.xlu0 0
        %869 = vperm.xlu0 %868, %v866
        %v870 = vpop.permute.xlu0 %869
        %v872 = vmul.f32 %v870, %v756
        %v873 = vadd.f32 %v865, %v872
        %v874 = vmul.f32 %v863, %v873
        %v875 = vpack.c.bf16 %v874, %v874
        %s876 = smul.addr %s758, 4
        %s877 = scalar_lea.vmem %s407, %s876 [#allocation4]
        %878 = vst.msk [vmem:[%s877] sm:$0xf] %vm565, %v875
        %s879 = scalar_select %p757, 1, 2
        %s880 = smul.addr %s879, 4
        %s881 = scalar_lea.vmem [#allocation2], %s880
        %v882 = vld [vmem:[%s881] sm:$0xf]
        %v883 = vunpack.c.l.bf16 %v882
        %s884 = sadd.s32 %s879, 4
        %s885 = smul.addr %s884, 4
        %s886 = scalar_lea.vmem [#allocation2], %s885
        %v887 = vld [vmem:[%s886] sm:$0xf]
        %v888 = vunpack.c.l.bf16 %v887
        %s889 = sadd.s32 %s879, 8
        %s890 = smul.addr %s889, 4
        %s891 = scalar_lea.vmem [#allocation2], %s890
        %v892 = vld [vmem:[%s891] sm:$0xf]
        %v893 = vunpack.c.l.bf16 %v892
        %s894 = smul.u32 %s879, 8
        %s895 = scalar_lea.vmem %s436, %s894
        %v896 = vld [vmem:[%s895] sm:$0xff]
        %v897 = vpack.c.bf16 %v873, %v873
        %v899 = vsel %vm783, %v897, 0
        %901 = vmatprep.subr.bf16.mxu0 0
        %902 = vmatpush1.bf16.msra.mxu0 0
        %903 = vmatprep.subr.bf16.mxu0 0
        %904 = vmatpush1.bf16.msra.mxu0 0
        %905 = vmatprep.subr.bf16.mxu0 0
        %906 = vmatpush1.bf16.msra.mxu0 0
        %907 = vmatprep.subr.bf16.mxu0 0
        %908 = vmatpush1.bf16.msra.mxu0 0
        %909 = vmatprep.subr.bf16.mxu0 0
        %910 = vmatpush1.bf16.msra.mxu0 0
        %911 = vmatprep.subr.bf16.mxu0 0
        %912 = vmatpush1.bf16.msra.mxu0 0
        %913 = vmatprep.subr.bf16.mxu0 0
        %914 = vmatpush1.bf16.msra.mxu0 0
        %915 = vmatprep.subr.bf16.mxu0 0
        %916 = vmatpush1.bf16.msra.mxu0 %v781
        %917 = vmatprep.subr.bf16.mxu0 0
        %918 = vmatpush2.bf16.msra.mxu0 0
        %919 = vmatprep.subr.bf16.mxu0 0
        %920 = vmatpush2.bf16.msra.mxu0 0
        %921 = vmatprep.subr.bf16.mxu0 0
        %922 = vmatpush2.bf16.msra.mxu0 0
        %923 = vmatprep.subr.bf16.mxu0 0
        %924 = vmatpush2.bf16.msra.mxu0 0
        %925 = vmatprep.subr.bf16.mxu0 0
        %926 = vmatpush2.bf16.msra.mxu0 0
        %927 = vmatprep.subr.bf16.mxu0 0
        %928 = vmatpush2.bf16.msra.mxu0 0
        %929 = vmatprep.subr.bf16.mxu0 0
        %930 = vmatpush2.bf16.msra.mxu0 0
        %931 = vmatprep.subr.bf16.mxu0 0
        %932 = vmatpush2.bf16.msra.mxu0 0
        %933 = vmatprep.mubr.bf16.mxu0 0
        %934 = vmatmul.mubr.bf16.gmra.mxu0 %v899
        %v935 = vpop.f32.mrf.mxu0
        %v936 = vadd.f32 0.0, %v935
        %v937 = vpop.f32.mrf.mxu0
        %v938 = vpop.f32.mrf.mxu0
        %v939 = vpop.f32.mrf.mxu0
        %940 = vdwg.mxu0
        %v941 = vadd.f32 %v883, %v936
        %v942 = vxor.u32 %v941, 2147483648
        %v943 = vmul.f32 %v942, 1.442695
        %v944 = vpow.pop %v943
        %v945 = vadd.f32 %v944, 1.0
        %v946 = vrcp.pop %v945
        %v947 = vmul.f32 1.0, %v946
        %949 = vrot.lane.b32.xlu0 %v936, 112
        %v950 = vpop.permute.xlu0 %949
        %v952 = vadd.f32 %v888, %v950
        %v953 = vxor.u32 %v952, 2147483648
        %v954 = vmul.f32 %v953, 1.442695
        %v955 = vpow.pop %v954
        %v956 = vadd.f32 %v955, 1.0
        %v957 = vrcp.pop %v956
        %v958 = vmul.f32 1.0, %v957
        %v959 = vadd.f32 %v936, %v846
        %961 = vrot.lane.b32.xlu0 %v959, 96
        %v962 = vpop.permute.xlu0 %961
        %v964 = vmul.f32 %v947, %v962
        %v965 = vadd.f32 %v893, %v964
        %v966 = vtanh.pop %v965
        %v967 = vsub.f32 1.0, %v958
        %v968 = vmul.f32 %v967, %v966
        %v969 = vmul.f32 %v958, %v873
        %v970 = vadd.f32 %v968, %v969
        %972 = vset.pattern.permute.xlu0 0
        %973 = vperm.xlu0 %972, %v896
        %v974 = vpop.permute.xlu0 %973
        %v976 = vmul.f32 %v974, %v970
        %v977 = vsub.f32 1.0, %v896
        %979 = vset.pattern.permute.xlu0 0
        %980 = vperm.xlu0 %979, %v977
        %v981 = vpop.permute.xlu0 %980
        %v983 = vmul.f32 %v981, %v873
        %v984 = vadd.f32 %v976, %v983
        %v985 = vmul.f32 %v974, %v984
        %v986 = vpack.c.bf16 %v985, %v985
        %s987 = smul.addr %s879, 4
        %s988 = scalar_lea.vmem %s407, %s987 [#allocation4]
        %989 = vst.msk [vmem:[%s988] sm:$0xf] %vm565, %v986
        %s990 = scalar_select %p757, 2, 1
        %s991 = smul.addr %s990, 4
        %s992 = scalar_lea.vmem [#allocation2], %s991
        %v993 = vld [vmem:[%s992] sm:$0xf]
        %v994 = vunpack.c.l.bf16 %v993
        %s995 = sadd.s32 %s990, 4
        %s996 = smul.addr %s995, 4
        %s997 = scalar_lea.vmem [#allocation2], %s996
        %v998 = vld [vmem:[%s997] sm:$0xf]
        %v999 = vunpack.c.l.bf16 %v998
        %s1000 = sadd.s32 %s990, 8
        %s1001 = smul.addr %s1000, 4
        %s1002 = scalar_lea.vmem [#allocation2], %s1001
        %v1003 = vld [vmem:[%s1002] sm:$0xf]
        %v1004 = vunpack.c.l.bf16 %v1003
        %s1005 = smul.u32 %s990, 8
        %s1006 = scalar_lea.vmem %s436, %s1005
        %v1007 = vld [vmem:[%s1006] sm:$0xff]
        %v1008 = vpack.c.bf16 %v984, %v984
        %v1010 = vsel %vm783, %v1008, 0
        %1012 = vmatprep.subr.bf16.mxu0 0
        %1013 = vmatpush1.bf16.msra.mxu0 0
        %1014 = vmatprep.subr.bf16.mxu0 0
        %1015 = vmatpush1.bf16.msra.mxu0 0
        %1016 = vmatprep.subr.bf16.mxu0 0
        %1017 = vmatpush1.bf16.msra.mxu0 0
        %1018 = vmatprep.subr.bf16.mxu0 0
        %1019 = vmatpush1.bf16.msra.mxu0 0
        %1020 = vmatprep.subr.bf16.mxu0 0
        %1021 = vmatpush1.bf16.msra.mxu0 0
        %1022 = vmatprep.subr.bf16.mxu0 0
        %1023 = vmatpush1.bf16.msra.mxu0 0
        %1024 = vmatprep.subr.bf16.mxu0 0
        %1025 = vmatpush1.bf16.msra.mxu0 0
        %1026 = vmatprep.subr.bf16.mxu0 0
        %1027 = vmatpush1.bf16.msra.mxu0 %v781
        %1028 = vmatprep.subr.bf16.mxu0 0
        %1029 = vmatpush2.bf16.msra.mxu0 0
        %1030 = vmatprep.subr.bf16.mxu0 0
        %1031 = vmatpush2.bf16.msra.mxu0 0
        %1032 = vmatprep.subr.bf16.mxu0 0
        %1033 = vmatpush2.bf16.msra.mxu0 0
        %1034 = vmatprep.subr.bf16.mxu0 0
        %1035 = vmatpush2.bf16.msra.mxu0 0
        %1036 = vmatprep.subr.bf16.mxu0 0
        %1037 = vmatpush2.bf16.msra.mxu0 0
        %1038 = vmatprep.subr.bf16.mxu0 0
        %1039 = vmatpush2.bf16.msra.mxu0 0
        %1040 = vmatprep.subr.bf16.mxu0 0
        %1041 = vmatpush2.bf16.msra.mxu0 0
        %1042 = vmatprep.subr.bf16.mxu0 0
        %1043 = vmatpush2.bf16.msra.mxu0 0
        %1044 = vmatprep.mubr.bf16.mxu0 0
        %1045 = vmatmul.mubr.bf16.gmra.mxu0 %v1010
        %v1046 = vpop.f32.mrf.mxu0
        %v1047 = vadd.f32 0.0, %v1046
        %v1048 = vpop.f32.mrf.mxu0
        %v1049 = vpop.f32.mrf.mxu0
        %v1050 = vpop.f32.mrf.mxu0
        %1051 = vdwg.mxu0
        %v1052 = vadd.f32 %v994, %v1047
        %v1053 = vxor.u32 %v1052, 2147483648
        %v1054 = vmul.f32 %v1053, 1.442695
        %v1055 = vpow.pop %v1054
        %v1056 = vadd.f32 %v1055, 1.0
        %v1057 = vrcp.pop %v1056
        %v1058 = vmul.f32 1.0, %v1057
        %1060 = vrot.lane.b32.xlu0 %v1047, 112
        %v1061 = vpop.permute.xlu0 %1060
        %v1063 = vadd.f32 %v999, %v1061
        %v1064 = vxor.u32 %v1063, 2147483648
        %v1065 = vmul.f32 %v1064, 1.442695
        %v1066 = vpow.pop %v1065
        %v1067 = vadd.f32 %v1066, 1.0
        %v1068 = vrcp.pop %v1067
        %v1069 = vmul.f32 1.0, %v1068
        %v1070 = vadd.f32 %v1047, %v846
        %1072 = vrot.lane.b32.xlu0 %v1070, 96
        %v1073 = vpop.permute.xlu0 %1072
        %v1075 = vmul.f32 %v1058, %v1073
        %v1076 = vadd.f32 %v1004, %v1075
        %v1077 = vtanh.pop %v1076
        %v1078 = vsub.f32 1.0, %v1069
        %v1079 = vmul.f32 %v1078, %v1077
        %v1080 = vmul.f32 %v1069, %v984
        %v1081 = vadd.f32 %v1079, %v1080
        %1083 = vset.pattern.permute.xlu0 0
        %1084 = vperm.xlu0 %1083, %v1007
        %v1085 = vpop.permute.xlu0 %1084
        %v1087 = vmul.f32 %v1085, %v1081
        %v1088 = vsub.f32 1.0, %v1007
        %1090 = vset.pattern.permute.xlu0 0
        %1091 = vperm.xlu0 %1090, %v1088
        %v1092 = vpop.permute.xlu0 %1091
        %v1094 = vmul.f32 %v1092, %v984
        %v1095 = vadd.f32 %v1087, %v1094
        %v1096 = vmul.f32 %v1085, %v1095
        %v1097 = vpack.c.bf16 %v1096, %v1096
        %s1098 = smul.addr %s990, 4
        %s1099 = scalar_lea.vmem %s407, %s1098 [#allocation4]
        %1100 = vst.msk [vmem:[%s1099] sm:$0xf] %vm565, %v1097
        %s1101 = scalar_select %p757, 3, 0
        %s1102 = smul.addr %s1101, 4
        %s1103 = scalar_lea.vmem [#allocation2], %s1102
        %v1104 = vld [vmem:[%s1103] sm:$0xf]
        %v1105 = vunpack.c.l.bf16 %v1104
        %s1106 = sadd.s32 %s1101, 4
        %s1107 = smul.addr %s1106, 4
        %s1108 = scalar_lea.vmem [#allocation2], %s1107
        %v1109 = vld [vmem:[%s1108] sm:$0xf]
        %v1110 = vunpack.c.l.bf16 %v1109
        %s1111 = sadd.s32 %s1101, 8
        %s1112 = smul.addr %s1111, 4
        %s1113 = scalar_lea.vmem [#allocation2], %s1112
        %v1114 = vld [vmem:[%s1113] sm:$0xf]
        %v1115 = vunpack.c.l.bf16 %v1114
        %s1116 = smul.u32 %s1101, 8
        %s1117 = scalar_lea.vmem %s436, %s1116
        %v1118 = vld [vmem:[%s1117] sm:$0xff]
        %v1119 = vpack.c.bf16 %v1095, %v1095
        %v1121 = vsel %vm783, %v1119, 0
        %1123 = vmatprep.subr.bf16.mxu0 0
        %1124 = vmatpush1.bf16.msra.mxu0 0
        %1125 = vmatprep.subr.bf16.mxu0 0
        %1126 = vmatpush1.bf16.msra.mxu0 0
        %1127 = vmatprep.subr.bf16.mxu0 0
        %1128 = vmatpush1.bf16.msra.mxu0 0
        %1129 = vmatprep.subr.bf16.mxu0 0
        %1130 = vmatpush1.bf16.msra.mxu0 0
        %1131 = vmatprep.subr.bf16.mxu0 0
        %1132 = vmatpush1.bf16.msra.mxu0 0
        %1133 = vmatprep.subr.bf16.mxu0 0
        %1134 = vmatpush1.bf16.msra.mxu0 0
        %1135 = vmatprep.subr.bf16.mxu0 0
        %1136 = vmatpush1.bf16.msra.mxu0 0
        %1137 = vmatprep.subr.bf16.mxu0 0
        %1138 = vmatpush1.bf16.msra.mxu0 %v781
        %1139 = vmatprep.subr.bf16.mxu0 0
        %1140 = vmatpush2.bf16.msra.mxu0 0
        %1141 = vmatprep.subr.bf16.mxu0 0
        %1142 = vmatpush2.bf16.msra.mxu0 0
        %1143 = vmatprep.subr.bf16.mxu0 0
        %1144 = vmatpush2.bf16.msra.mxu0 0
        %1145 = vmatprep.subr.bf16.mxu0 0
        %1146 = vmatpush2.bf16.msra.mxu0 0
        %1147 = vmatprep.subr.bf16.mxu0 0
        %1148 = vmatpush2.bf16.msra.mxu0 0
        %1149 = vmatprep.subr.bf16.mxu0 0
        %1150 = vmatpush2.bf16.msra.mxu0 0
        %1151 = vmatprep.subr.bf16.mxu0 0
        %1152 = vmatpush2.bf16.msra.mxu0 0
        %1153 = vmatprep.subr.bf16.mxu0 0
        %1154 = vmatpush2.bf16.msra.mxu0 0
        %1155 = vmatprep.mubr.bf16.mxu0 0
        %1156 = vmatmul.mubr.bf16.gmra.mxu0 %v1121
        %v1157 = vpop.f32.mrf.mxu0
        %v1158 = vadd.f32 0.0, %v1157
        %v1159 = vpop.f32.mrf.mxu0
        %v1160 = vpop.f32.mrf.mxu0
        %v1161 = vpop.f32.mrf.mxu0
        %1162 = vdwg.mxu0
        %v1163 = vadd.f32 %v1105, %v1158
        %v1164 = vxor.u32 %v1163, 2147483648
        %v1165 = vmul.f32 %v1164, 1.442695
        %v1166 = vpow.pop %v1165
        %v1167 = vadd.f32 %v1166, 1.0
        %v1168 = vrcp.pop %v1167
        %v1169 = vmul.f32 1.0, %v1168
        %1171 = vrot.lane.b32.xlu0 %v1158, 112
        %v1172 = vpop.permute.xlu0 %1171
        %v1174 = vadd.f32 %v1110, %v1172
        %v1175 = vxor.u32 %v1174, 2147483648
        %v1176 = vmul.f32 %v1175, 1.442695
        %v1177 = vpow.pop %v1176
        %v1178 = vadd.f32 %v1177, 1.0
        %v1179 = vrcp.pop %v1178
        %v1180 = vmul.f32 1.0, %v1179
        %v1181 = vadd.f32 %v1158, %v846
        %1183 = vrot.lane.b32.xlu0 %v1181, 96
        %v1184 = vpop.permute.xlu0 %1183
        %v1186 = vmul.f32 %v1169, %v1184
        %v1187 = vadd.f32 %v1115, %v1186
        %v1188 = vtanh.pop %v1187
        %v1189 = vsub.f32 1.0, %v1180
        %v1190 = vmul.f32 %v1189, %v1188
        %v1191 = vmul.f32 %v1180, %v1095
        %v1192 = vadd.f32 %v1190, %v1191
        %1194 = vset.pattern.permute.xlu0 0
        %1195 = vperm.xlu0 %1194, %v1118
        %v1196 = vpop.permute.xlu0 %1195
        %v1198 = vmul.f32 %v1196, %v1192
        %v1199 = vsub.f32 1.0, %v1118
        %1201 = vset.pattern.permute.xlu0 0
        %1202 = vperm.xlu0 %1201, %v1199
        %v1203 = vpop.permute.xlu0 %1202
        %v1205 = vmul.f32 %v1203, %v1095
        %v1206 = vadd.f32 %v1198, %v1205
        %v1207 = vmul.f32 %v1196, %v1206
        %v1208 = vpack.c.bf16 %v1207, %v1207
        %s1209 = smul.addr %s1101, 4
        %s1210 = scalar_lea.vmem %s407, %s1209 [#allocation4]
        %1211 = vst.msk [vmem:[%s1210] sm:$0xf] %vm565, %v1208
        %1212 = vst.msk [vmem:[#allocation3] sm:$0xff] %vm783, %v1206
        %1213 = vst.msk [vmem:[%s414] sm:$0xff] %vm783, %v1206
        %s1214 = sand.u32 %s227, 1
        %s1215 = scalar_lea.sflag [#allocation5], %s1214
        %s1216 = sand.u32 %s227, 1
        %s1217 = smul.addr %s1216, 16
        %s1218 = scalar_lea.vmem [#allocation4], %s1217
        %s1219 = sand.u32 %s253, 1
        %s1220 = scalar_lea.sflag [#allocation7], %s1219
        %s1221 = sand.u32 %s253, 1
        %s1222 = smul.addr %s1221, 8
        %s1223 = scalar_lea.vmem [#allocation6], %s1222
        // Predicated region
        $region49: #{tpu_custom_call.1} parent=43 // pred_check
          %p1224 = pneg %p237
        $region50: #{tpu_custom_call.1} parent=43 // pred_check_branch
          %1226 = sbr.rel (%p1224) target = $region52
        $region51: #{tpu_custom_call.1} parent=43 // pred_region
          %s1227 = smul.u32 %s30, 2
          %s1228 = ssub.s32 1, %s1227
          %s1229 = smul.u32 %s29, %s1228
          %s1230 = sadd.s32 %s30, %s1229
          %s1231 = smul.u32 4, %s1230
          %s1233 = ssub.s32 256, 256
          %1234 = vsyncadd %s1215, %s1233
          %s1235 = smul.addr %s29, 8
          %s1236 = sadd.s32 %s1231, %s1235
          %s1237 = smul.addr %s1236, 64
          %s1238 = scalar_lea.hbm %s6, %s1237
          %s1239 = sshll.u32 %s1218, 4
          %s1240 = int_to_ptr.vmem [resolvable:$true] %s1239
          %1245 = dma.vmem_to_hbm [thread:$0]  %s1240, 256, %s1238, %s1215, 64, 64, 4
        $region52: #{tpu_custom_call.1} parent=43 // pred_fallthru
          _
        // Predicated region
        $region53: #{tpu_custom_call.1} parent=43 // pred_check
          %p1246 = pneg %p263
        $region54: #{tpu_custom_call.1} parent=43 // pred_check_branch
          %1248 = sbr.rel (%p1246) target = $region56
        $region55: #{tpu_custom_call.1} parent=43 // pred_region
          %s1250 = ssub.s32 128, 128
          %1251 = vsyncadd %s1220, %s1250
          %s1252 = smul.addr %s29, 128
          %s1253 = scalar_lea.hbm %s7, %s1252
          %s1255 = sshll.u32 %s1223, 4
          %s1256 = int_to_ptr.vmem [resolvable:$true] %s1255
          %1258 = dma.vmem_to_hbm [thread:$0]  %s1256, 128, %s1253, %s1220
        $region56: #{tpu_custom_call.1} parent=43 // pred_fallthru
          _
      $region44: #{tpu_custom_call.1} parent=5 // pred_fallthru
        _
      %p1259 = scmp.le.s32.totalorder 2, %s20
      // Predicated region
      $region57: #{tpu_custom_call.1} parent=5 // pred_check
        %p1260 = pneg %p1259
      $region58: #{tpu_custom_call.1} parent=5 // pred_check_branch
        %1262 = sbr.rel (%p1260) target = $region60
      $region59: #{tpu_custom_call.1} parent=5 // pred_region
        %s1263 = ssub.s32 %s20, 2
        // Predicated region
        $region61: #{tpu_custom_call.1} parent=59 // pred_check
          %p1264 = pneg %p243
        $region62: #{tpu_custom_call.1} parent=59 // pred_check_branch
          %1266 = sbr.rel (%p1264) target = $region64
        $region63: #{tpu_custom_call.1} parent=59 // pred_region
          %s1267 = sand.u32 %s228, 1
          %s1268 = scalar_lea.sflag [#allocation5], %s1267
          %s1269 = sand.u32 %s228, 1
          %s1270 = smul.addr %s1269, 16
          %s1271 = scalar_lea.vmem [#allocation4], %s1270
          %1272 = dma.done %s1268, 256
        $region64: #{tpu_custom_call.1} parent=59 // pred_fallthru
          _
        // Predicated region
        $region65: #{tpu_custom_call.1} parent=59 // pred_check
          %p1273 = pneg %p269
        $region66: #{tpu_custom_call.1} parent=59 // pred_check_branch
          %1275 = sbr.rel (%p1273) target = $region68
        $region67: #{tpu_custom_call.1} parent=59 // pred_region
          %s1276 = sand.u32 %s254, 1
          %s1277 = scalar_lea.sflag [#allocation7], %s1276
          %s1278 = sand.u32 %s254, 1
          %s1279 = smul.addr %s1278, 8
          %s1280 = scalar_lea.vmem [#allocation6], %s1279
          %1281 = dma.done %s1277, 128
        $region68: #{tpu_custom_call.1} parent=59 // pred_fallthru
          _
      $region60: #{tpu_custom_call.1} parent=5 // pred_fallthru
        _
    $region6: #{tpu_custom_call.1} parent=1 // loop_footer
      %s24 = sadd.s32 1, %s20
    $region7: #{tpu_custom_call.1} parent=1 // loop_footer_branch
      %19 = sbr.rel target = $region3
    $region8: #{tpu_custom_call.1} parent=1 // loop_exit
      _
    %1282 = vsyncpa [#allocation5], 1
    %s1283 = scalar_lea.sflag [#allocation5], 1
    %1284 = vsyncpa %s1283, 1
    %1285 = vsyncpa [#allocation7], 1
    %s1286 = scalar_lea.sflag [#allocation7], 1
    %1287 = vsyncpa %s1286, 1

</llo_original>
